<compile_context>
chip_gen: v7x
topology: tpu7x:2x2x1
jax: 0.10.0
libtpu: 0.0.40
codegen_flags: <defaults>
</compile_context>

<pallas_src>
import functools

import jax
import jax.numpy as jnp
import numpy as np
from jax import lax
from jax.experimental import pallas as pl
from jax.experimental.pallas import tpu as pltpu


def _round_up(x, m):
    return ((x + m - 1) // m) * m


# ----------------------------------------------------------------------------
# Fused kernel: one grid step = (batch element, output-row strip)
# ----------------------------------------------------------------------------
def _fused_mbconv_kernel(x_ref, wexp_ref, se_ref, be_ref,
                         wdw_ref, sd_ref, bd_ref,
                         wpwt_ref, sp_ref, bp_ref,
                         o_ref, exp_scr,
                         *, CinP, H, W, K, S, pad, Th, Wo, Hs, WpP, CexpP,
                         has_expand, bot_halo):
    # x_ref    : (Hp, WpP, CinP)   spatially pre-padded NHWC image (this batch elem)
    # wexp_ref : (CinP, CexpP)     1x1 expand weights (channel-padded, f32)
    # wdw_ref  : (K*K, CexpP)      depthwise taps (f32)
    # wpwt_ref : (CoutP, CexpP)    transposed 1x1 project weights (bf16 MXU operand)
    # se/be, sd/bd : (1, CexpP)    folded BN scale/bias (expand / depthwise)
    # sp/bp    : (CoutP, 1)        folded BN scale/bias (project)
    # o_ref    : (CoutP, Th*Wo)    output strip, channels x pixels (lane-dense)
    # exp_scr  : (Hs, WpP, CexpP)  VMEM-resident expanded activation for the strip
    s = pl.program_id(1)
    row0 = s * (Th * S)                        # first padded-input row of the strip
    if (Th * S) % 8 == 0:
        row0 = pl.multiple_of(row0, 8)

    # ---------------- Stage 1: 1x1 expand + BN + ReLU (MXU) -------------------
    x_slab = x_ref[pl.ds(row0, Hs), :, :]                         # (Hs, WpP, CinP)
    x2d = x_slab.reshape(Hs * WpP, CinP).astype(jnp.float32)      # free: WpP % 8 == 0
    acc = jnp.dot(x2d, wexp_ref[...],
                  preferred_element_type=jnp.float32)             # (Hs*WpP, CexpP)
    if has_expand:
        acc = jnp.maximum(acc * se_ref[...] + be_ref[...], 0.0)
    exp_scr[...] = acc.reshape(Hs, WpP, CexpP)

    # The reference module zero-pads AFTER expand+BN+ReLU (Conv2d padding), so
    # border positions of the expanded activation must be exactly 0.  Border
    # zeroing (static slices + pl.when) replaces the old full-tensor mask.
    if pad > 0:
        exp_scr[:, 0:pad, :] = jnp.zeros((Hs, pad, CexpP), jnp.float32)
    rgt = pad + W
    if WpP - rgt > 0:
        exp_scr[:, rgt:, :] = jnp.zeros((Hs, WpP - rgt, CexpP), jnp.float32)
    if pad > 0:
        @pl.when(s == 0)
        def _():                                                   # top halo rows
            exp_scr[0:pad, :, :] = jnp.zeros((pad, WpP, CexpP), jnp.float32)
    if bot_halo > 0:
        @pl.when(s == pl.num_programs(1) - 1)
        def _():                                                   # bottom halo rows
            exp_scr[Hs - bot_halo:, :, :] = jnp.zeros(
                (bot_halo, WpP, CexpP), jnp.float32)

    # ---------------- Stage 2: depthwise KxK + BN + ReLU (VPU + XLU) ----------
    wdw = wdw_ref[...]                                             # (K*K, CexpP)
    acc2 = None
    if S == 1:
        for kh in range(K):
            # One aligned full-width slab per kh; column shifts via XLU roll on
            # the flattened (row-major) sublane axis -> no misaligned relayouts.
            slab = exp_scr[kh:kh + Th, :, :]                        # (Th, WpP, CexpP)
            flat = slab.reshape(Th * WpP, CexpP)
            for kw in range(K):
                if kw == 0:
                    shifted = flat
                else:
                    shifted = pltpu.roll(flat, shift=Th * WpP - kw, axis=0)
                patch = shifted.reshape(Th, WpP, CexpP)[:, :Wo, :]  # (Th, Wo, CexpP)
                term = patch * wdw[kh * K + kw:kh * K + kw + 1, :]
                acc2 = term if acc2 is None else acc2 + term
    else:
        # TODO(synk): write the expand output phase-separated in stage 1 so the
        # stride>1 taps become aligned static slices (avoids strided relayouts).
        e = exp_scr[...]
        phases = {}
        for a in range(S):
            for b in range(S):
                phases[(a, b)] = lax.slice(e, (a, b, 0), e.shape, (S, S, 1))
        for kh in range(K):
            for kw in range(K):
                ph = phases[(kh % S, kw % S)]
                r0, c0 = kh // S, kw // S
                patch = ph[r0:r0 + Th, c0:c0 + Wo, :]
                term = patch * wdw[kh * K + kw:kh * K + kw + 1, :]
                acc2 = term if acc2 is None else acc2 + term
    acc2 = jnp.maximum(acc2 * sd_ref[...] + bd_ref[...], 0.0)       # (Th, Wo, CexpP)

    # ---------------- Stage 3: 1x1 project + BN (bf16 MXU, f32 acc) -----------
    dw2d = acc2.reshape(Th * Wo, CexpP).astype(jnp.bfloat16)        # pixels x C
    y = lax.dot_general(wpwt_ref[...], dw2d,
                        dimension_numbers=(((1,), (1,)), ((), ())),
                        preferred_element_type=jnp.float32)          # (CoutP, Th*Wo)
    y = y * sp_ref[...] + bp_ref[...]
    o_ref[...] = y.astype(o_ref.dtype)


# ----------------------------------------------------------------------------
# Wrapper
# ----------------------------------------------------------------------------
def _fold_bn(gamma, beta, mean, var, eps=1e-3):
    # eps=1e-3 matches BatchNorm2d(..., eps=0.001) in the reference module.
    scale = gamma / jnp.sqrt(var + eps)
    bias = beta - mean * scale
    return scale.astype(jnp.float32), bias.astype(jnp.float32)


def _vmem_scratch_budget():
    """Generation-aware scratch budget: ~1/6 of physical VMEM for the strip."""
    try:
        phys = int(pltpu.get_tpu_info().vmem_capacity_bytes)
    except Exception:
        phys = 64 << 20   # most conservative (v7x per-TC)
    return max(phys // 6, 4 << 20), phys


def _pick_strip_rows(Ho, Wo, S, K, WpP, CexpP, N, pad, budget):
    """Pick the output-row strip height Th (divisor of Ho)."""
    ok = []
    for th in range(1, Ho + 1):
        if Ho % th:
            continue
        if th * S < pad:            # keep halo rows confined to first/last strips
            continue
        hs = (th - 1) * S + K
        # scratch + ~2x scratch-sized live stage values, all f32
        if 3 * hs * WpP * CexpP * 4 > budget:
            continue
        if (th * Wo) % 128 == 0 or th == Ho:   # lane-dense output pixel blocks
            ok.append(th)
    if not ok:
        return Ho                   # full image per step (always a legal block)
    if N >= 2:
        # Batch axis already gives >=2 parallel grid points (feeds both v7x TCs);
        # the largest strip minimizes halo recompute / per-step overhead, which
        # is also the single-TC (v5e/v6e) preference.
        return max(ok)
    multi = [t for t in ok if Ho // t >= 2]    # N==1: keep 2 strips for megacore
    return max(multi) if multi else max(ok)


def mb_inverted_conv_forward(x_nchw, params, *, kernel_size, stride, expand_ratio):
    N, Cin, H, W = x_nchw.shape
    K, S = int(kernel_size), int(stride)
    pad = K // 2
    Hp, Wp = H + 2 * pad, W + 2 * pad
    WpP = _round_up(Wp, 8)          # sublane-aligned scratch width (roll/reshape clean)
    Ho = (H + 2 * pad - K) // S + 1
    Wo = (W + 2 * pad - K) // S + 1
    has_expand = expand_ratio > 1

    Cexp = params["w_dw"].shape[-1]
    Cout = params["w_pw"].shape[1]
    CinP = _round_up(Cin, 8)
    CexpP = _round_up(Cexp, 128)
    CoutP = _round_up(Cout, 8)
    dtype = x_nchw.dtype

    def pad_vec(v, n):
        return jnp.zeros((1, n), jnp.float32).at[0, :v.shape[0]].set(v)

    # ---- fold BN and zero-pad channels so padded lanes stay exactly zero ----
    if has_expand:
        se, be = _fold_bn(*params["bn_exp"])
        w_exp = params["w_exp"].astype(jnp.float32)                 # (Cin, Cexp)
        w_exp_p = jnp.zeros((CinP, CexpP), jnp.float32).at[:Cin, :Cexp].set(w_exp)
        se_p, be_p = pad_vec(se, CexpP), pad_vec(be, CexpP)
    else:
        # No inverted bottleneck: stage 1 is only the NHWC->channel-lane move.
        w_exp_p = jnp.zeros((CinP, CexpP), jnp.float32).at[:Cin, :Cin].set(
            jnp.eye(Cin, dtype=jnp.float32))
        se_p = jnp.ones((1, CexpP), jnp.float32)
        be_p = jnp.zeros((1, CexpP), jnp.float32)

    sd, bd = _fold_bn(*params["bn_dw"])
    w_dw = params["w_dw"].astype(jnp.float32).reshape(K * K, Cexp)
    w_dw_p = jnp.zeros((K * K, CexpP), jnp.float32).at[:, :Cexp].set(w_dw)
    sd_p, bd_p = pad_vec(sd, CexpP), pad_vec(bd, CexpP)

    sp, bp = _fold_bn(*params["bn_pw"])
    w_pw_t = params["w_pw"].astype(jnp.float32).T                   # (Cout, Cexp)
    # bf16 MXU operand for the project matmul; accumulation stays f32 in-kernel.
    w_pw_t_p = (jnp.zeros((CoutP, CexpP), jnp.float32)
                .at[:Cout, :Cexp].set(w_pw_t)).astype(jnp.bfloat16)
    sp_p = jnp.zeros((CoutP, 1), jnp.float32).at[:Cout, 0].set(sp)
    bp_p = jnp.zeros((CoutP, 1), jnp.float32).at[:Cout, 0].set(bp)

    # Layout + spatial/channel zero-pad of the *narrow* Cin input only (a few KB).
    # The Cexp-wide intermediate never leaves VMEM.
    x_nhwc = jnp.transpose(x_nchw, (0, 2, 3, 1))
    xp = jnp.pad(x_nhwc, ((0, 0), (pad, pad),
                          (pad, WpP - W - pad), (0, CinP - Cin)))

    budget, phys = _vmem_scratch_budget()
    Th = _pick_strip_rows(Ho, Wo, S, K, WpP, CexpP, N, pad, budget)
    assert Ho % Th == 0 and Th * S >= pad
    n_strips = Ho // Th
    Hs = (Th - 1) * S + K
    Tpix = Th * Wo
    # rows of the last strip that fall in the bottom zero-padding region
    bot_halo = max(0, (Ho - 1) * S + K - (pad + H))

    kernel = functools.partial(
        _fused_mbconv_kernel, CinP=CinP, H=H, W=W, K=K, S=S, pad=pad,
        Th=Th, Wo=Wo, Hs=Hs, WpP=WpP, CexpP=CexpP,
        has_expand=has_expand, bot_halo=bot_halo)

    # ---- VMEM footprint estimate + cost estimate ----------------------------
    itemsize = np.dtype(dtype).itemsize
    weights = (w_exp_p, se_p, be_p, w_dw_p, sd_p, bd_p, w_pw_t_p, sp_p, bp_p)
    wbytes = sum(int(a.size) * a.dtype.itemsize for a in weights)
    scratch_bytes = Hs * WpP * CexpP * 4
    in_block_bytes = Hp * WpP * CinP * itemsize
    out_block_bytes = CoutP * Tpix * 4
    est = 3 * scratch_bytes + 2 * (in_block_bytes + out_block_bytes + wbytes)
    cp_kwargs = dict(dimension_semantics=("parallel", "parallel"))
    if est > (12 << 20):
        cp_kwargs["vmem_limit_bytes"] = int(min(max(2 * est, 32 << 20),
                                                phys - (4 << 20)))

    flops = int(2 * N * Ho * Wo * CexpP * (CinP + CoutP)
                + 2 * N * K * K * Ho * Wo * CexpP)
    bytes_accessed = int(xp.size * itemsize + N * CoutP * Ho * Wo * 4 + wbytes)
    cost = pl.CostEstimate(flops=flops, transcendentals=0,
                           bytes_accessed=bytes_accessed)

    # TODO(synk): for very large H*W the whole padded image is delivered per
    # batch element; a production version would halo-DMA input row strips
    # (pl.ANY + make_async_copy) instead of one full-image fetch.
    out_t = pl.pallas_call(
        kernel,
        out_shape=jax.ShapeDtypeStruct((N, CoutP, Ho * Wo), dtype),
        grid_spec=pltpu.PrefetchScalarGridSpec(
            num_scalar_prefetch=0,
            grid=(N, n_strips),
            in_specs=[
                # padded input image: block index constant over strips -> one
                # HBM fetch per batch element
                pl.BlockSpec((None, Hp, WpP, CinP), lambda n, s: (n, 0, 0, 0)),
                pl.BlockSpec((CinP, CexpP), lambda n, s: (0, 0)),
                pl.BlockSpec((1, CexpP), lambda n, s: (0, 0)),
                pl.BlockSpec((1, CexpP), lambda n, s: (0, 0)),
                pl.BlockSpec((K * K, CexpP), lambda n, s: (0, 0)),
                pl.BlockSpec((1, CexpP), lambda n, s: (0, 0)),
                pl.BlockSpec((1, CexpP), lambda n, s: (0, 0)),
                pl.BlockSpec((CoutP, CexpP), lambda n, s: (0, 0)),
                pl.BlockSpec((CoutP, 1), lambda n, s: (0, 0)),
                pl.BlockSpec((CoutP, 1), lambda n, s: (0, 0)),
            ],
            out_specs=pl.BlockSpec((None, CoutP, Tpix), lambda n, s: (n, 0, s)),
            scratch_shapes=[pltpu.VMEM((Hs, WpP, CexpP), jnp.float32)],
        ),
        compiler_params=pltpu.CompilerParams(**cp_kwargs),
        cost_estimate=cost,
    )(xp, w_exp_p, se_p, be_p, w_dw_p, sd_p, bd_p, w_pw_t_p, sp_p, bp_p)

    # (N, CoutP, Ho*Wo) -> NCHW; reshape is contiguous and the slice only trims
    # zero-padded channels.
    return out_t[:, :Cout, :].reshape(N, Cout, Ho, Wo)


# ----------------------------------------------------------------------------
# Parameter init (eval-mode BN stats) and pure-JAX reference
# ----------------------------------------------------------------------------
def init_mb_inverted_conv_params(key, in_channels, out_channels, kernel_size,
                                 expand_ratio):
    feature_dim = int(round(in_channels * expand_ratio)) if expand_ratio > 1 else in_channels
    ks = jax.random.split(key, 15)
    p = {}
    if expand_ratio > 1:
        p["w_exp"] = 0.1 * jax.random.normal(ks[0], (in_channels, feature_dim), jnp.float32)
        p["bn_exp"] = (1.0 + 0.1 * jax.random.normal(ks[1], (feature_dim,)),
                       0.1 * jax.random.normal(ks[2], (feature_dim,)),
                       0.1 * jax.random.normal(ks[3], (feature_dim,)),
                       jax.random.uniform(ks[4], (feature_dim,), minval=0.5, maxval=1.5))
    p["w_dw"] = 0.1 * jax.random.normal(ks[5], (kernel_size, kernel_size, feature_dim), jnp.float32)
    p["bn_dw"] = (1.0 + 0.1 * jax.random.normal(ks[6], (feature_dim,)),
                  0.1 * jax.random.normal(ks[7], (feature_dim,)),
                  0.1 * jax.random.normal(ks[8], (feature_dim,)),
                  jax.random.uniform(ks[9], (feature_dim,), minval=0.5, maxval=1.5))
    p["w_pw"] = 0.1 * jax.random.normal(ks[10], (feature_dim, out_channels), jnp.float32)
    p["bn_pw"] = (1.0 + 0.1 * jax.random.normal(ks[11], (out_channels,)),
                  0.1 * jax.random.normal(ks[12], (out_channels,)),
                  0.1 * jax.random.normal(ks[13], (out_channels,)),
                  jax.random.uniform(ks[14], (out_channels,), minval=0.5, maxval=1.5))
    return p


def _reference_forward(x_nchw, params, *, kernel_size, stride, expand_ratio):
    x = jnp.transpose(x_nchw, (0, 2, 3, 1))
    dn = ("NHWC", "HWIO", "NHWC")
    if expand_ratio > 1:
        cin, cexp = params["w_exp"].shape
        w = params["w_exp"].reshape(1, 1, cin, cexp)
        x = lax.conv_general_dilated(x, w, (1, 1), "VALID", dimension_numbers=dn)
        s, b = _fold_bn(*params["bn_exp"])
        x = jnp.maximum(x * s + b, 0.0)
    K = kernel_size
    C = params["w_dw"].shape[-1]
    wd = params["w_dw"].reshape(K, K, 1, C)
    pad = K // 2
    x = lax.conv_general_dilated(x, wd, (stride, stride), [(pad, pad), (pad, pad)],
                                 dimension_numbers=dn, feature_group_count=C)
    s, b = _fold_bn(*params["bn_dw"])
    x = jnp.maximum(x * s + b, 0.0)
    cexp, cout = params["w_pw"].shape
    wp = params["w_pw"].reshape(1, 1, cexp, cout)
    x = lax.conv_general_dilated(x, wp, (1, 1), "VALID", dimension_numbers=dn)
    s, b = _fold_bn(*params["bn_pw"])
    x = x * s + b
    return jnp.transpose(x, (0, 3, 1, 2))


if __name__ == "__main__":
    # MBInvertedConvLayer(in_channels=4, out_channels=8, kernel_size=3,
    #                     stride=1, expand_ratio=6)
    in_channels, out_channels, kernel_size, stride, expand_ratio = 4, 8, 3, 1, 6
    N, H, W = 2, 16, 16

    key = jax.random.PRNGKey(0)
    kx, kp = jax.random.split(key)
    x = jax.random.normal(kx, (N, in_channels, H, W), jnp.float32)
    params = init_mb_inverted_conv_params(kp, in_channels, out_channels,
                                          kernel_size, expand_ratio)

    out = mb_inverted_conv_forward(x, params, kernel_size=kernel_size,
                                   stride=stride, expand_ratio=expand_ratio)
    out = jax.block_until_ready(out)

    ref = _reference_forward(x, params, kernel_size=kernel_size,
                             stride=stride, expand_ratio=expand_ratio)
    assert out.shape == (N, out_channels, H // stride, W // stride), out.shape
    np.testing.assert_allclose(np.asarray(out), np.asarray(ref), rtol=1e-2, atol=1e-2)

    print("KERNEL_OK")
</pallas_src>

<mosaic_0001>
module attributes {stable_mosaic.version = 11 : i64} {
  func.func @_fused_mbconv_kernel(%arg0: i32, %arg1: i32, %arg2: memref<1x18x24x8xf32, #tpu.memory_space<vmem>>, %arg3: memref<8x128xf32, #tpu.memory_space<vmem>>, %arg4: memref<1x128xf32, #tpu.memory_space<vmem>>, %arg5: memref<1x128xf32, #tpu.memory_space<vmem>>, %arg6: memref<9x128xf32, #tpu.memory_space<vmem>>, %arg7: memref<1x128xf32, #tpu.memory_space<vmem>>, %arg8: memref<1x128xf32, #tpu.memory_space<vmem>>, %arg9: memref<8x128xbf16, #tpu.memory_space<vmem>>, %arg10: memref<8x1xf32, #tpu.memory_space<vmem>>, %arg11: memref<8x1xf32, #tpu.memory_space<vmem>>, %arg12: memref<1x8x256xf32, #tpu.memory_space<vmem>>, %arg13: memref<18x24x128xf32, #tpu.memory_space<vmem>>) attributes {dimension_semantics = [#tpu.dimension_semantics<parallel>, #tpu.dimension_semantics<parallel>], iteration_bounds = array<i64: 2, 1>, scalar_prefetch = 0 : i64, scratch_operands = 1 : i64, tpu.core_type = #tpu.core_type<tc>, window_params = [{transform_indices = @transform_0, window_bounds = array<i64: 1, 18, 24, 8>}, {pipeline_mode = #tpu.pipeline_mode<synchronous>, transform_indices = @transform_1, window_bounds = array<i64: 8, 128>}, {pipeline_mode = #tpu.pipeline_mode<synchronous>, transform_indices = @transform_2, window_bounds = array<i64: 1, 128>}, {pipeline_mode = #tpu.pipeline_mode<synchronous>, transform_indices = @transform_3, window_bounds = array<i64: 1, 128>}, {pipeline_mode = #tpu.pipeline_mode<synchronous>, transform_indices = @transform_4, window_bounds = array<i64: 9, 128>}, {pipeline_mode = #tpu.pipeline_mode<synchronous>, transform_indices = @transform_5, window_bounds = array<i64: 1, 128>}, {pipeline_mode = #tpu.pipeline_mode<synchronous>, transform_indices = @transform_6, window_bounds = array<i64: 1, 128>}, {pipeline_mode = #tpu.pipeline_mode<synchronous>, transform_indices = @transform_7, window_bounds = array<i64: 8, 128>}, {pipeline_mode = #tpu.pipeline_mode<synchronous>, transform_indices = @transform_8, window_bounds = array<i64: 8, 1>}, {pipeline_mode = #tpu.pipeline_mode<synchronous>, transform_indices = @transform_9, window_bounds = array<i64: 8, 1>}, {transform_indices = @transform_10, window_bounds = array<i64: 1, 8, 256>}]} {
    %c16_i32 = arith.constant 16 : i32
    %0 = arith.muli %arg1, %c16_i32 : i32
    %1 = tpu.assume_multiple %0, 8 : i32
    %c0 = arith.constant 0 : index
    %2 = arith.index_cast %1 : i32 to index
    %c0_0 = arith.constant 0 : index
    %c0_1 = arith.constant 0 : index
    %3 = vector.load %arg2[%c0, %2, %c0_0, %c0_1] : memref<1x18x24x8xf32, #tpu.memory_space<vmem>>, vector<1x18x24x8xf32>
    %4 = vector.shape_cast %3 : vector<1x18x24x8xf32> to vector<18x24x8xf32>
    %5 = vector.shape_cast %4 : vector<18x24x8xf32> to vector<432x8xf32>
    %c0_2 = arith.constant 0 : index
    %c0_3 = arith.constant 0 : index
    %6 = vector.load %arg3[%c0_2, %c0_3] : memref<8x128xf32, #tpu.memory_space<vmem>>, vector<8x128xf32>
    %cst = arith.constant dense<0.000000e+00> : vector<432x128xf32>
    %7 = tpu.matmul %5, %6, %cst {dimension_numbers = #tpu.dot_dimension_numbers<[1], [0], [0], [1], [0, 0, 1, 1], [], []>} : vector<432x8xf32>, vector<8x128xf32>, vector<432x128xf32> -> vector<432x128xf32>
    %c0_4 = arith.constant 0 : index
    %c0_5 = arith.constant 0 : index
    %8 = vector.load %arg4[%c0_4, %c0_5] : memref<1x128xf32, #tpu.memory_space<vmem>>, vector<1x128xf32>
    %9 = vector.broadcast %8 : vector<1x128xf32> to vector<432x128xf32>
    %10 = arith.mulf %7, %9 : vector<432x128xf32>
    %c0_6 = arith.constant 0 : index
    %c0_7 = arith.constant 0 : index
    %11 = vector.load %arg5[%c0_6, %c0_7] : memref<1x128xf32, #tpu.memory_space<vmem>>, vector<1x128xf32>
    %12 = vector.broadcast %11 : vector<1x128xf32> to vector<432x128xf32>
    %13 = arith.addf %10, %12 : vector<432x128xf32>
    %cst_8 = arith.constant 0.000000e+00 : f32
    %14 = vector.broadcast %cst_8 : f32 to vector<432x128xf32>
    %15 = arith.maximumf %13, %14 : vector<432x128xf32>
    %16 = vector.shape_cast %15 : vector<432x128xf32> to vector<18x24x128xf32>
    %c0_9 = arith.constant 0 : index
    %c0_10 = arith.constant 0 : index
    %c0_11 = arith.constant 0 : index
    %17 = vector.load %arg13[%c0_9, %c0_10, %c0_11] : memref<18x24x128xf32, #tpu.memory_space<vmem>>, vector<18x24x128xf32>
    tpu.vector_store %arg13[%c0_9, %c0_10, %c0_11], %16 {strides = array<i32>} : memref<18x24x128xf32, #tpu.memory_space<vmem>>, vector<18x24x128xf32>,
    %cst_12 = arith.constant 0.000000e+00 : f32
    %18 = vector.broadcast %cst_12 : f32 to vector<18x1x128xf32>
    %c0_13 = arith.constant 0 : index
    %c0_14 = arith.constant 0 : index
    %c0_15 = arith.constant 0 : index
    %19 = vector.load %arg13[%c0_13, %c0_14, %c0_15] : memref<18x24x128xf32, #tpu.memory_space<vmem>>, vector<18x1x128xf32>
    tpu.vector_store %arg13[%c0_13, %c0_14, %c0_15], %18 {strides = array<i32>} : memref<18x24x128xf32, #tpu.memory_space<vmem>>, vector<18x1x128xf32>,
    %cst_16 = arith.constant 0.000000e+00 : f32
    %20 = vector.broadcast %cst_16 : f32 to vector<18x7x128xf32>
    %c0_17 = arith.constant 0 : index
    %c17 = arith.constant 17 : index
    %c0_18 = arith.constant 0 : index
    %21 = vector.load %arg13[%c0_17, %c17, %c0_18] : memref<18x24x128xf32, #tpu.memory_space<vmem>>, vector<18x7x128xf32>
    tpu.vector_store %arg13[%c0_17, %c17, %c0_18], %20 {strides = array<i32>} : memref<18x24x128xf32, #tpu.memory_space<vmem>>, vector<18x7x128xf32>,
    %c0_i32 = arith.constant 0 : i32
    %22 = arith.cmpi eq, %arg1, %c0_i32 : i32
    %23 = arith.extui %22 : i1 to i32
    %c0_i32_19 = arith.constant 0 : i32
    %24 = arith.cmpi ne, %23, %c0_i32_19 : i32
    scf.if %24 {
      %cst_50 = arith.constant 0.000000e+00 : f32
      %126 = vector.broadcast %cst_50 : f32 to vector<1x24x128xf32>
      %c0_51 = arith.constant 0 : index
      %c0_52 = arith.constant 0 : index
      %c0_53 = arith.constant 0 : index
      %127 = vector.load %arg13[%c0_51, %c0_52, %c0_53] : memref<18x24x128xf32, #tpu.memory_space<vmem>>, vector<1x24x128xf32>
      tpu.vector_store %arg13[%c0_51, %c0_52, %c0_53], %126 {strides = array<i32>} : memref<18x24x128xf32, #tpu.memory_space<vmem>>, vector<1x24x128xf32>,
    } else {
    }
    %c0_i32_20 = arith.constant 0 : i32
    %25 = arith.cmpi eq, %arg1, %c0_i32_20 : i32
    %26 = arith.extui %25 : i1 to i32
    %c0_i32_21 = arith.constant 0 : i32
    %27 = arith.cmpi ne, %26, %c0_i32_21 : i32
    scf.if %27 {
      %cst_50 = arith.constant 0.000000e+00 : f32
      %126 = vector.broadcast %cst_50 : f32 to vector<1x24x128xf32>
      %c17_51 = arith.constant 17 : index
      %c0_52 = arith.constant 0 : index
      %c0_53 = arith.constant 0 : index
      %127 = vector.load %arg13[%c17_51, %c0_52, %c0_53] : memref<18x24x128xf32, #tpu.memory_space<vmem>>, vector<1x24x128xf32>
      tpu.vector_store %arg13[%c17_51, %c0_52, %c0_53], %126 {strides = array<i32>} : memref<18x24x128xf32, #tpu.memory_space<vmem>>, vector<1x24x128xf32>,
    } else {
    }
    %c0_22 = arith.constant 0 : index
    %c0_23 = arith.constant 0 : index
    %28 = vector.load %arg6[%c0_22, %c0_23] : memref<9x128xf32, #tpu.memory_space<vmem>>, vector<9x128xf32>
    %c0_24 = arith.constant 0 : index
    %c0_25 = arith.constant 0 : index
    %c0_26 = arith.constant 0 : index
    %29 = vector.load %arg13[%c0_24, %c0_25, %c0_26] : memref<18x24x128xf32, #tpu.memory_space<vmem>>, vector<16x24x128xf32>
    %30 = vector.shape_cast %29 : vector<16x24x128xf32> to vector<384x128xf32>
    %31 = vector.shape_cast %30 : vector<384x128xf32> to vector<16x24x128xf32>
    %32 = vector.extract_strided_slice %31 {offsets = [0, 0, 0], sizes = [16, 16, 128], strides = [1, 1, 1]} : vector<16x24x128xf32> to vector<16x16x128xf32>
    %33 = vector.extract_strided_slice %28 {offsets = [0, 0], sizes = [1, 128], strides = [1, 1]} : vector<9x128xf32> to vector<1x128xf32>
    %34 = vector.shape_cast %33 : vector<1x128xf32> to vector<1x1x128xf32>
    %35 = vector.broadcast %34 : vector<1x1x128xf32> to vector<16x16x128xf32>
    %36 = arith.mulf %32, %35 : vector<16x16x128xf32>
    %c383_i32 = arith.constant 383 : i32
    %37 = tpu.dynamic_rotate %30 by %c383_i32 dim 0 : vector<384x128xf32>, i32 -> vector<384x128xf32>
    %38 = vector.shape_cast %37 : vector<384x128xf32> to vector<16x24x128xf32>
    %39 = vector.extract_strided_slice %38 {offsets = [0, 0, 0], sizes = [16, 16, 128], strides = [1, 1, 1]} : vector<16x24x128xf32> to vector<16x16x128xf32>
    %40 = vector.extract_strided_slice %28 {offsets = [1, 0], sizes = [1, 128], strides = [1, 1]} : vector<9x128xf32> to vector<1x128xf32>
    %41 = vector.shape_cast %40 : vector<1x128xf32> to vector<1x1x128xf32>
    %42 = vector.broadcast %41 : vector<1x1x128xf32> to vector<16x16x128xf32>
    %43 = arith.mulf %39, %42 : vector<16x16x128xf32>
    %44 = arith.addf %36, %43 : vector<16x16x128xf32>
    %c382_i32 = arith.constant 382 : i32
    %45 = tpu.dynamic_rotate %30 by %c382_i32 dim 0 : vector<384x128xf32>, i32 -> vector<384x128xf32>
    %46 = vector.shape_cast %45 : vector<384x128xf32> to vector<16x24x128xf32>
    %47 = vector.extract_strided_slice %46 {offsets = [0, 0, 0], sizes = [16, 16, 128], strides = [1, 1, 1]} : vector<16x24x128xf32> to vector<16x16x128xf32>
    %48 = vector.extract_strided_slice %28 {offsets = [2, 0], sizes = [1, 128], strides = [1, 1]} : vector<9x128xf32> to vector<1x128xf32>
    %49 = vector.shape_cast %48 : vector<1x128xf32> to vector<1x1x128xf32>
    %50 = vector.broadcast %49 : vector<1x1x128xf32> to vector<16x16x128xf32>
    %51 = arith.mulf %47, %50 : vector<16x16x128xf32>
    %52 = arith.addf %44, %51 : vector<16x16x128xf32>
    %c1 = arith.constant 1 : index
    %c0_27 = arith.constant 0 : index
    %c0_28 = arith.constant 0 : index
    %53 = vector.load %arg13[%c1, %c0_27, %c0_28] : memref<18x24x128xf32, #tpu.memory_space<vmem>>, vector<16x24x128xf32>
    %54 = vector.shape_cast %53 : vector<16x24x128xf32> to vector<384x128xf32>
    %55 = vector.shape_cast %54 : vector<384x128xf32> to vector<16x24x128xf32>
    %56 = vector.extract_strided_slice %55 {offsets = [0, 0, 0], sizes = [16, 16, 128], strides = [1, 1, 1]} : vector<16x24x128xf32> to vector<16x16x128xf32>
    %57 = vector.extract_strided_slice %28 {offsets = [3, 0], sizes = [1, 128], strides = [1, 1]} : vector<9x128xf32> to vector<1x128xf32>
    %58 = vector.shape_cast %57 : vector<1x128xf32> to vector<1x1x128xf32>
    %59 = vector.broadcast %58 : vector<1x1x128xf32> to vector<16x16x128xf32>
    %60 = arith.mulf %56, %59 : vector<16x16x128xf32>
    %61 = arith.addf %52, %60 : vector<16x16x128xf32>
    %c383_i32_29 = arith.constant 383 : i32
    %62 = tpu.dynamic_rotate %54 by %c383_i32_29 dim 0 : vector<384x128xf32>, i32 -> vector<384x128xf32>
    %63 = vector.shape_cast %62 : vector<384x128xf32> to vector<16x24x128xf32>
    %64 = vector.extract_strided_slice %63 {offsets = [0, 0, 0], sizes = [16, 16, 128], strides = [1, 1, 1]} : vector<16x24x128xf32> to vector<16x16x128xf32>
    %65 = vector.extract_strided_slice %28 {offsets = [4, 0], sizes = [1, 128], strides = [1, 1]} : vector<9x128xf32> to vector<1x128xf32>
    %66 = vector.shape_cast %65 : vector<1x128xf32> to vector<1x1x128xf32>
    %67 = vector.broadcast %66 : vector<1x1x128xf32> to vector<16x16x128xf32>
    %68 = arith.mulf %64, %67 : vector<16x16x128xf32>
    %69 = arith.addf %61, %68 : vector<16x16x128xf32>
    %c382_i32_30 = arith.constant 382 : i32
    %70 = tpu.dynamic_rotate %54 by %c382_i32_30 dim 0 : vector<384x128xf32>, i32 -> vector<384x128xf32>
    %71 = vector.shape_cast %70 : vector<384x128xf32> to vector<16x24x128xf32>
    %72 = vector.extract_strided_slice %71 {offsets = [0, 0, 0], sizes = [16, 16, 128], strides = [1, 1, 1]} : vector<16x24x128xf32> to vector<16x16x128xf32>
    %73 = vector.extract_strided_slice %28 {offsets = [5, 0], sizes = [1, 128], strides = [1, 1]} : vector<9x128xf32> to vector<1x128xf32>
    %74 = vector.shape_cast %73 : vector<1x128xf32> to vector<1x1x128xf32>
    %75 = vector.broadcast %74 : vector<1x1x128xf32> to vector<16x16x128xf32>
    %76 = arith.mulf %72, %75 : vector<16x16x128xf32>
    %77 = arith.addf %69, %76 : vector<16x16x128xf32>
    %c2 = arith.constant 2 : index
    %c0_31 = arith.constant 0 : index
    %c0_32 = arith.constant 0 : index
    %78 = vector.load %arg13[%c2, %c0_31, %c0_32] : memref<18x24x128xf32, #tpu.memory_space<vmem>>, vector<16x24x128xf32>
    %79 = vector.shape_cast %78 : vector<16x24x128xf32> to vector<384x128xf32>
    %80 = vector.shape_cast %79 : vector<384x128xf32> to vector<16x24x128xf32>
    %81 = vector.extract_strided_slice %80 {offsets = [0, 0, 0], sizes = [16, 16, 128], strides = [1, 1, 1]} : vector<16x24x128xf32> to vector<16x16x128xf32>
    %82 = vector.extract_strided_slice %28 {offsets = [6, 0], sizes = [1, 128], strides = [1, 1]} : vector<9x128xf32> to vector<1x128xf32>
    %83 = vector.shape_cast %82 : vector<1x128xf32> to vector<1x1x128xf32>
    %84 = vector.broadcast %83 : vector<1x1x128xf32> to vector<16x16x128xf32>
    %85 = arith.mulf %81, %84 : vector<16x16x128xf32>
    %86 = arith.addf %77, %85 : vector<16x16x128xf32>
    %c383_i32_33 = arith.constant 383 : i32
    %87 = tpu.dynamic_rotate %79 by %c383_i32_33 dim 0 : vector<384x128xf32>, i32 -> vector<384x128xf32>
    %88 = vector.shape_cast %87 : vector<384x128xf32> to vector<16x24x128xf32>
    %89 = vector.extract_strided_slice %88 {offsets = [0, 0, 0], sizes = [16, 16, 128], strides = [1, 1, 1]} : vector<16x24x128xf32> to vector<16x16x128xf32>
    %90 = vector.extract_strided_slice %28 {offsets = [7, 0], sizes = [1, 128], strides = [1, 1]} : vector<9x128xf32> to vector<1x128xf32>
    %91 = vector.shape_cast %90 : vector<1x128xf32> to vector<1x1x128xf32>
    %92 = vector.broadcast %91 : vector<1x1x128xf32> to vector<16x16x128xf32>
    %93 = arith.mulf %89, %92 : vector<16x16x128xf32>
    %94 = arith.addf %86, %93 : vector<16x16x128xf32>
    %c382_i32_34 = arith.constant 382 : i32
    %95 = tpu.dynamic_rotate %79 by %c382_i32_34 dim 0 : vector<384x128xf32>, i32 -> vector<384x128xf32>
    %96 = vector.shape_cast %95 : vector<384x128xf32> to vector<16x24x128xf32>
    %97 = vector.extract_strided_slice %96 {offsets = [0, 0, 0], sizes = [16, 16, 128], strides = [1, 1, 1]} : vector<16x24x128xf32> to vector<16x16x128xf32>
    %98 = vector.extract_strided_slice %28 {offsets = [8, 0], sizes = [1, 128], strides = [1, 1]} : vector<9x128xf32> to vector<1x128xf32>
    %99 = vector.shape_cast %98 : vector<1x128xf32> to vector<1x1x128xf32>
    %100 = vector.broadcast %99 : vector<1x1x128xf32> to vector<16x16x128xf32>
    %101 = arith.mulf %97, %100 : vector<16x16x128xf32>
    %102 = arith.addf %94, %101 : vector<16x16x128xf32>
    %c0_35 = arith.constant 0 : index
    %c0_36 = arith.constant 0 : index
    %103 = vector.load %arg7[%c0_35, %c0_36] : memref<1x128xf32, #tpu.memory_space<vmem>>, vector<1x128xf32>
    %104 = vector.shape_cast %103 : vector<1x128xf32> to vector<1x1x128xf32>
    %105 = vector.broadcast %104 : vector<1x1x128xf32> to vector<16x16x128xf32>
    %106 = arith.mulf %102, %105 : vector<16x16x128xf32>
    %c0_37 = arith.constant 0 : index
    %c0_38 = arith.constant 0 : index
    %107 = vector.load %arg8[%c0_37, %c0_38] : memref<1x128xf32, #tpu.memory_space<vmem>>, vector<1x128xf32>
    %108 = vector.shape_cast %107 : vector<1x128xf32> to vector<1x1x128xf32>
    %109 = vector.broadcast %108 : vector<1x1x128xf32> to vector<16x16x128xf32>
    %110 = arith.addf %106, %109 : vector<16x16x128xf32>
    %cst_39 = arith.constant 0.000000e+00 : f32
    %111 = vector.broadcast %cst_39 : f32 to vector<16x16x128xf32>
    %112 = arith.maximumf %110, %111 : vector<16x16x128xf32>
    %113 = vector.shape_cast %112 : vector<16x16x128xf32> to vector<256x128xf32>
    %114 = arith.truncf %113 : vector<256x128xf32> to vector<256x128xbf16>
    %c0_40 = arith.constant 0 : index
    %c0_41 = arith.constant 0 : index
    %115 = vector.load %arg9[%c0_40, %c0_41] : memref<8x128xbf16, #tpu.memory_space<vmem>>, vector<8x128xbf16>
    %cst_42 = arith.constant dense<0.000000e+00> : vector<8x256xf32>
    %116 = tpu.matmul %115, %114, %cst_42 {dimension_numbers = #tpu.dot_dimension_numbers<[1], [1], [0], [0], [0, 0, 1, 0], [], []>} : vector<8x128xbf16>, vector<256x128xbf16>, vector<8x256xf32> -> vector<8x256xf32>
    %c0_43 = arith.constant 0 : index
    %c0_44 = arith.constant 0 : index
    %117 = vector.load %arg10[%c0_43, %c0_44] : memref<8x1xf32, #tpu.memory_space<vmem>>, vector<8x1xf32>
    %118 = vector.broadcast %117 : vector<8x1xf32> to vector<8x256xf32>
    %119 = arith.mulf %116, %118 : vector<8x256xf32>
    %c0_45 = arith.constant 0 : index
    %c0_46 = arith.constant 0 : index
    %120 = vector.load %arg11[%c0_45, %c0_46] : memref<8x1xf32, #tpu.memory_space<vmem>>, vector<8x1xf32>
    %121 = vector.broadcast %120 : vector<8x1xf32> to vector<8x256xf32>
    %122 = arith.addf %119, %121 : vector<8x256xf32>
    %c0_47 = arith.constant 0 : index
    %c0_48 = arith.constant 0 : index
    %c0_49 = arith.constant 0 : index
    %123 = vector.load %arg12[%c0_47, %c0_48, %c0_49] : memref<1x8x256xf32, #tpu.memory_space<vmem>>, vector<1x8x256xf32>
    %124 = vector.shape_cast %123 : vector<1x8x256xf32> to vector<8x256xf32>
    %125 = vector.shape_cast %122 : vector<8x256xf32> to vector<1x8x256xf32>
    tpu.vector_store %arg12[%c0_47, %c0_48, %c0_49], %125 {strides = array<i32>} : memref<1x8x256xf32, #tpu.memory_space<vmem>>, vector<1x8x256xf32>,
    return
  }
  func.func @transform_0(%arg0: i32, %arg1: i32) -> (i32, i32, i32, i32) {
    %c0_i32 = arith.constant 0 : i32
    %c0_i32_0 = arith.constant 0 : i32
    %c0_i32_1 = arith.constant 0 : i32
    %c0_i32_2 = arith.constant 0 : i32
    return %arg0, %c0_i32, %c0_i32_0, %c0_i32_1 : i32, i32, i32, i32
  }
  func.func @transform_1(%arg0: i32, %arg1: i32) -> (i32, i32) {
    %c0_i32 = arith.constant 0 : i32
    %c0_i32_0 = arith.constant 0 : i32
    %c0_i32_1 = arith.constant 0 : i32
    return %c0_i32, %c0_i32_0 : i32, i32
  }
  func.func @transform_2(%arg0: i32, %arg1: i32) -> (i32, i32) {
    %c0_i32 = arith.constant 0 : i32
    %c0_i32_0 = arith.constant 0 : i32
    %c0_i32_1 = arith.constant 0 : i32
    return %c0_i32, %c0_i32_0 : i32, i32
  }
  func.func @transform_3(%arg0: i32, %arg1: i32) -> (i32, i32) {
    %c0_i32 = arith.constant 0 : i32
    %c0_i32_0 = arith.constant 0 : i32
    %c0_i32_1 = arith.constant 0 : i32
    return %c0_i32, %c0_i32_0 : i32, i32
  }
  func.func @transform_4(%arg0: i32, %arg1: i32) -> (i32, i32) {
    %c0_i32 = arith.constant 0 : i32
    %c0_i32_0 = arith.constant 0 : i32
    %c0_i32_1 = arith.constant 0 : i32
    return %c0_i32, %c0_i32_0 : i32, i32
  }
  func.func @transform_5(%arg0: i32, %arg1: i32) -> (i32, i32) {
    %c0_i32 = arith.constant 0 : i32
    %c0_i32_0 = arith.constant 0 : i32
    %c0_i32_1 = arith.constant 0 : i32
    return %c0_i32, %c0_i32_0 : i32, i32
  }
  func.func @transform_6(%arg0: i32, %arg1: i32) -> (i32, i32) {
    %c0_i32 = arith.constant 0 : i32
    %c0_i32_0 = arith.constant 0 : i32
    %c0_i32_1 = arith.constant 0 : i32
    return %c0_i32, %c0_i32_0 : i32, i32
  }
  func.func @transform_7(%arg0: i32, %arg1: i32) -> (i32, i32) {
    %c0_i32 = arith.constant 0 : i32
    %c0_i32_0 = arith.constant 0 : i32
    %c0_i32_1 = arith.constant 0 : i32
    return %c0_i32, %c0_i32_0 : i32, i32
  }
  func.func @transform_8(%arg0: i32, %arg1: i32) -> (i32, i32) {
    %c0_i32 = arith.constant 0 : i32
    %c0_i32_0 = arith.constant 0 : i32
    %c0_i32_1 = arith.constant 0 : i32
    return %c0_i32, %c0_i32_0 : i32, i32
  }
  func.func @transform_9(%arg0: i32, %arg1: i32) -> (i32, i32) {
    %c0_i32 = arith.constant 0 : i32
    %c0_i32_0 = arith.constant 0 : i32
    %c0_i32_1 = arith.constant 0 : i32
    return %c0_i32, %c0_i32_0 : i32, i32
  }
  func.func @transform_10(%arg0: i32, %arg1: i32) -> (i32, i32, i32) {
    %c0_i32 = arith.constant 0 : i32
    %c0_i32_0 = arith.constant 0 : i32
    return %arg0, %c0_i32, %arg1 : i32, i32, i32
  }
}

</mosaic_0001>

<llo_original>
// kernel: tpu_custom_call.1
$region0: #{tpu_custom_call.1}
  #allocation0 [shape = 'u32[]', space=smem, size = 0x4, offset = 0x4, fixed_abs, tag = 'smem constant byte address 0x4 - core index']
  #allocation1 [shape = 'u32[144,128]{1,0:T(1,128)}', space=vmem, size = 0x12000, scoped, tag = 'internal scratch']
  #allocation2 [shape = 'f32[18,24,128]{2,1,0:T(8,128)}', space=vmem, size = 0x36000, scoped, tag = 'scratch operand']
  %s0 = inlined_call_operand.vmem [shape: f32[2,18,24,8], index: 0, kind: input, shape index: {}]
  %s1 = inlined_call_operand.vmem [shape: f32[8,128], index: 1, kind: input, shape index: {}]
  %s2 = inlined_call_operand.vmem [shape: f32[1,128], index: 2, kind: input, shape index: {}]
  %s3 = inlined_call_operand.vmem [shape: f32[1,128], index: 3, kind: input, shape index: {}]
  %s4 = inlined_call_operand.vmem [shape: f32[9,128], index: 4, kind: input, shape index: {}]
  %s5 = inlined_call_operand.vmem [shape: f32[1,128], index: 5, kind: input, shape index: {}]
  %s6 = inlined_call_operand.vmem [shape: f32[1,128], index: 6, kind: input, shape index: {}]
  %s7 = inlined_call_operand.vmem [shape: bf16[8,128], index: 7, kind: input, shape index: {}]
  %s8 = inlined_call_operand.vmem [shape: f32[8,1], index: 8, kind: input, shape index: {}]
  %s9 = inlined_call_operand.vmem [shape: f32[8,1], index: 9, kind: input, shape index: {}]
  %s10 = inlined_call_operand.hbm [shape: f32[2,8,256], index: 10, kind: output, shape index: {}]
  %s11 = sld [smem:[#allocation0]]
  $region77: #{tpu_custom_call.1} parent=0
    _
  %s13 = ssub.s32 1, %s11
  %s14 = scalar_select 0, %s13, %s11
  $region1: #{tpu_custom_call.1} parent=0
    #allocation3 [shape = 'u8[16384]{0}', space=vmem, size = 0x4000, scoped, tag = 'output window, operand 0']
    #allocation4 [shape = 's32[2]{0}', space=sflag, size = 0x8, scoped, tag = 'scoped memory for tpu_custom_call.1']
    %15 = vsyncpa [#allocation4], 0
    %s16 = scalar_lea.sflag [#allocation4], 1
    %17 = vsyncpa %s16, 0
    loop: start=0, step=1, limit=4
    $region2: #{tpu_custom_call.1} parent=1 // loop_pre_header
      _
    $region3: #{tpu_custom_call.1} parent=1 // loop_header
      %s19 = sphi 0, %s23
      %p20 = scmp.ge.s32.totalorder %s19, 4
      %s26 = sphi 0, %s38
      %s27 = sphi 0, %s34
      %s28 = sphi 0, %s26
      %s29 = sphi 0, %s27
      %s30 = sphi 0, %s28
      %s31 = sphi 0, %s29
      %s41 = sphi 0, %s43
      %s44 = sphi 0, %s41
      %s45 = sphi 0, %s44
      %s61 = sphi 0, %s45
      %s65 = sphi 0, %s65
      %s67 = sphi 0, %s65
      %s68 = sphi 0, %s67
      %s82 = sphi 0, %s68
      %s86 = sphi 0, %s86
      %s88 = sphi 0, %s86
      %s89 = sphi 0, %s88
      %s103 = sphi 0, %s89
      %s107 = sphi 0, %s107
      %s109 = sphi 0, %s107
      %s110 = sphi 0, %s109
      %s124 = sphi 0, %s110
      %s128 = sphi 0, %s128
      %s130 = sphi 0, %s128
      %s131 = sphi 0, %s130
      %s145 = sphi 0, %s131
      %s149 = sphi 0, %s149
      %s151 = sphi 0, %s149
      %s152 = sphi 0, %s151
      %s166 = sphi 0, %s152
      %s170 = sphi 0, %s170
      %s172 = sphi 0, %s170
      %s173 = sphi 0, %s172
      %s187 = sphi 0, %s173
      %s191 = sphi 0, %s191
      %s193 = sphi 0, %s191
      %s194 = sphi 0, %s193
      %s208 = sphi 0, %s194
      %s212 = sphi 0, %s212
      %s214 = sphi 0, %s212
      %s215 = sphi 0, %s214
      %s229 = sphi 0, %s215
      %s233 = sphi 0, %s233
      %s235 = sphi 0, %s233
      %s236 = sphi 0, %s235
      %s250 = sphi 0, %s236
      %s258 = sphi 0, %s260
      %s261 = sphi 0, %s258
      %s262 = sphi 0, %s261
      %s278 = sphi 0, %s262
    $region4: #{tpu_custom_call.1} parent=1 // loop_header_branch
      %22 = sbr.rel (%p20) target = $region8
    $region5: #{tpu_custom_call.1} parent=1 // loop_body
      %s24 = ssub.s32 %s19, 1
      %s25 = ssub.s32 %s19, 2
      %s32 = sadd.s32 1, %s27
      %p33 = scmp.ge.s32.totalorder %s32, 1
      %s34 = scalar_select %p33, 0, %s32
      %s35 = sadd.s32 1, %s26
      %s36 = scalar_select %p33, %s35, %s26
      %p37 = scmp.ge.s32.totalorder %s36, 2
      %s38 = scalar_select %p37, 0, %s36
      %s39 = ssub.s32 %s26, %s38
      %p40 = scmp.eq.s32.totalorder %s39, 0
      %s42 = sadd.s32 %s41, 1
      %s43 = scalar_select %p40, %s41, %s42
      %p46 = pneg %p40
      %p47 = scmp.eq.s32.totalorder %s19, 1
      %p48 = por %p46, %p47
      %p49 = scmp.ne.s32.totalorder %s41, %s44
      %p50 = scmp.eq.s32.totalorder %s19, 0
      %p51 = por %p49, %p50
      %p52 = scmp.ne.s32.totalorder %s41, %s44
      %p53 = scmp.eq.s32.totalorder %s24, 1
      %p54 = por %p52, %p53
      %p55 = scmp.ne.s32.totalorder %s44, %s45
      %p56 = scmp.eq.s32.totalorder %s24, 0
      %p57 = por %p55, %p56
      %p58 = scmp.ne.s32.totalorder %s44, %s45
      %p59 = scmp.eq.s32.totalorder %s25, 1
      %p60 = por %p58, %p59
      %p62 = scmp.ne.s32.totalorder %s45, %s61
      %p63 = scmp.eq.s32.totalorder %s25, 0
      %p64 = por %p62, %p63
      %s66 = sadd.s32 %s65, 1
      %p69 = scmp.eq.s32.totalorder %s19, 1
      %p70 = scmp.ne.s32.totalorder %s65, %s67
      %p71 = scmp.eq.s32.totalorder %s19, 0
      %p72 = por %p70, %p71
      %p73 = scmp.ne.s32.totalorder %s65, %s67
      %p74 = scmp.eq.s32.totalorder %s24, 1
      %p75 = por %p73, %p74
      %p76 = scmp.ne.s32.totalorder %s67, %s68
      %p77 = scmp.eq.s32.totalorder %s24, 0
      %p78 = por %p76, %p77
      %p79 = scmp.ne.s32.totalorder %s67, %s68
      %p80 = scmp.eq.s32.totalorder %s25, 1
      %p81 = por %p79, %p80
      %p83 = scmp.ne.s32.totalorder %s68, %s82
      %p84 = scmp.eq.s32.totalorder %s25, 0
      %p85 = por %p83, %p84
      %s87 = sadd.s32 %s86, 1
      %p90 = scmp.eq.s32.totalorder %s19, 1
      %p91 = scmp.ne.s32.totalorder %s86, %s88
      %p92 = scmp.eq.s32.totalorder %s19, 0
      %p93 = por %p91, %p92
      %p94 = scmp.ne.s32.totalorder %s86, %s88
      %p95 = scmp.eq.s32.totalorder %s24, 1
      %p96 = por %p94, %p95
      %p97 = scmp.ne.s32.totalorder %s88, %s89
      %p98 = scmp.eq.s32.totalorder %s24, 0
      %p99 = por %p97, %p98
      %p100 = scmp.ne.s32.totalorder %s88, %s89
      %p101 = scmp.eq.s32.totalorder %s25, 1
      %p102 = por %p100, %p101
      %p104 = scmp.ne.s32.totalorder %s89, %s103
      %p105 = scmp.eq.s32.totalorder %s25, 0
      %p106 = por %p104, %p105
      %s108 = sadd.s32 %s107, 1
      %p111 = scmp.eq.s32.totalorder %s19, 1
      %p112 = scmp.ne.s32.totalorder %s107, %s109
      %p113 = scmp.eq.s32.totalorder %s19, 0
      %p114 = por %p112, %p113
      %p115 = scmp.ne.s32.totalorder %s107, %s109
      %p116 = scmp.eq.s32.totalorder %s24, 1
      %p117 = por %p115, %p116
      %p118 = scmp.ne.s32.totalorder %s109, %s110
      %p119 = scmp.eq.s32.totalorder %s24, 0
      %p120 = por %p118, %p119
      %p121 = scmp.ne.s32.totalorder %s109, %s110
      %p122 = scmp.eq.s32.totalorder %s25, 1
      %p123 = por %p121, %p122
      %p125 = scmp.ne.s32.totalorder %s110, %s124
      %p126 = scmp.eq.s32.totalorder %s25, 0
      %p127 = por %p125, %p126
      %s129 = sadd.s32 %s128, 1
      %p132 = scmp.eq.s32.totalorder %s19, 1
      %p133 = scmp.ne.s32.totalorder %s128, %s130
      %p134 = scmp.eq.s32.totalorder %s19, 0
      %p135 = por %p133, %p134
      %p136 = scmp.ne.s32.totalorder %s128, %s130
      %p137 = scmp.eq.s32.totalorder %s24, 1
      %p138 = por %p136, %p137
      %p139 = scmp.ne.s32.totalorder %s130, %s131
      %p140 = scmp.eq.s32.totalorder %s24, 0
      %p141 = por %p139, %p140
      %p142 = scmp.ne.s32.totalorder %s130, %s131
      %p143 = scmp.eq.s32.totalorder %s25, 1
      %p144 = por %p142, %p143
      %p146 = scmp.ne.s32.totalorder %s131, %s145
      %p147 = scmp.eq.s32.totalorder %s25, 0
      %p148 = por %p146, %p147
      %s150 = sadd.s32 %s149, 1
      %p153 = scmp.eq.s32.totalorder %s19, 1
      %p154 = scmp.ne.s32.totalorder %s149, %s151
      %p155 = scmp.eq.s32.totalorder %s19, 0
      %p156 = por %p154, %p155
      %p157 = scmp.ne.s32.totalorder %s149, %s151
      %p158 = scmp.eq.s32.totalorder %s24, 1
      %p159 = por %p157, %p158
      %p160 = scmp.ne.s32.totalorder %s151, %s152
      %p161 = scmp.eq.s32.totalorder %s24, 0
      %p162 = por %p160, %p161
      %p163 = scmp.ne.s32.totalorder %s151, %s152
      %p164 = scmp.eq.s32.totalorder %s25, 1
      %p165 = por %p163, %p164
      %p167 = scmp.ne.s32.totalorder %s152, %s166
      %p168 = scmp.eq.s32.totalorder %s25, 0
      %p169 = por %p167, %p168
      %s171 = sadd.s32 %s170, 1
      %p174 = scmp.eq.s32.totalorder %s19, 1
      %p175 = scmp.ne.s32.totalorder %s170, %s172
      %p176 = scmp.eq.s32.totalorder %s19, 0
      %p177 = por %p175, %p176
      %p178 = scmp.ne.s32.totalorder %s170, %s172
      %p179 = scmp.eq.s32.totalorder %s24, 1
      %p180 = por %p178, %p179
      %p181 = scmp.ne.s32.totalorder %s172, %s173
      %p182 = scmp.eq.s32.totalorder %s24, 0
      %p183 = por %p181, %p182
      %p184 = scmp.ne.s32.totalorder %s172, %s173
      %p185 = scmp.eq.s32.totalorder %s25, 1
      %p186 = por %p184, %p185
      %p188 = scmp.ne.s32.totalorder %s173, %s187
      %p189 = scmp.eq.s32.totalorder %s25, 0
      %p190 = por %p188, %p189
      %s192 = sadd.s32 %s191, 1
      %p195 = scmp.eq.s32.totalorder %s19, 1
      %p196 = scmp.ne.s32.totalorder %s191, %s193
      %p197 = scmp.eq.s32.totalorder %s19, 0
      %p198 = por %p196, %p197
      %p199 = scmp.ne.s32.totalorder %s191, %s193
      %p200 = scmp.eq.s32.totalorder %s24, 1
      %p201 = por %p199, %p200
      %p202 = scmp.ne.s32.totalorder %s193, %s194
      %p203 = scmp.eq.s32.totalorder %s24, 0
      %p204 = por %p202, %p203
      %p205 = scmp.ne.s32.totalorder %s193, %s194
      %p206 = scmp.eq.s32.totalorder %s25, 1
      %p207 = por %p205, %p206
      %p209 = scmp.ne.s32.totalorder %s194, %s208
      %p210 = scmp.eq.s32.totalorder %s25, 0
      %p211 = por %p209, %p210
      %s213 = sadd.s32 %s212, 1
      %p216 = scmp.eq.s32.totalorder %s19, 1
      %p217 = scmp.ne.s32.totalorder %s212, %s214
      %p218 = scmp.eq.s32.totalorder %s19, 0
      %p219 = por %p217, %p218
      %p220 = scmp.ne.s32.totalorder %s212, %s214
      %p221 = scmp.eq.s32.totalorder %s24, 1
      %p222 = por %p220, %p221
      %p223 = scmp.ne.s32.totalorder %s214, %s215
      %p224 = scmp.eq.s32.totalorder %s24, 0
      %p225 = por %p223, %p224
      %p226 = scmp.ne.s32.totalorder %s214, %s215
      %p227 = scmp.eq.s32.totalorder %s25, 1
      %p228 = por %p226, %p227
      %p230 = scmp.ne.s32.totalorder %s215, %s229
      %p231 = scmp.eq.s32.totalorder %s25, 0
      %p232 = por %p230, %p231
      %s234 = sadd.s32 %s233, 1
      %p237 = scmp.eq.s32.totalorder %s19, 1
      %p238 = scmp.ne.s32.totalorder %s233, %s235
      %p239 = scmp.eq.s32.totalorder %s19, 0
      %p240 = por %p238, %p239
      %p241 = scmp.ne.s32.totalorder %s233, %s235
      %p242 = scmp.eq.s32.totalorder %s24, 1
      %p243 = por %p241, %p242
      %p244 = scmp.ne.s32.totalorder %s235, %s236
      %p245 = scmp.eq.s32.totalorder %s24, 0
      %p246 = por %p244, %p245
      %p247 = scmp.ne.s32.totalorder %s235, %s236
      %p248 = scmp.eq.s32.totalorder %s25, 1
      %p249 = por %p247, %p248
      %p251 = scmp.ne.s32.totalorder %s236, %s250
      %p252 = scmp.eq.s32.totalorder %s25, 0
      %p253 = por %p251, %p252
      %s254 = ssub.s32 %s26, %s38
      %s255 = ssub.s32 %s27, %s34
      %s256 = sor.u32 %s254, %s255
      %p257 = scmp.eq.s32.totalorder %s256, 0
      %s259 = sadd.s32 %s258, 1
      %s260 = scalar_select %p257, %s258, %s259
      %p263 = pneg %p257
      %p264 = scmp.eq.s32.totalorder %s19, 1
      %p265 = por %p263, %p264
      %p266 = scmp.ne.s32.totalorder %s258, %s261
      %p267 = scmp.eq.s32.totalorder %s19, 0
      %p268 = por %p266, %p267
      %p269 = scmp.ne.s32.totalorder %s258, %s261
      %p270 = scmp.eq.s32.totalorder %s24, 1
      %p271 = por %p269, %p270
      %p272 = scmp.ne.s32.totalorder %s261, %s262
      %p273 = scmp.eq.s32.totalorder %s24, 0
      %p274 = por %p272, %p273
      %p275 = scmp.ne.s32.totalorder %s261, %s262
      %p276 = scmp.eq.s32.totalorder %s25, 1
      %p277 = por %p275, %p276
      %p279 = scmp.ne.s32.totalorder %s262, %s278
      %p280 = scmp.eq.s32.totalorder %s25, 0
      %p281 = por %p279, %p280
      %p282 = scmp.le.s32.totalorder 1, %s19
      %p283 = scmp.lt.s32.totalorder %s19, 3
      %p284 = pnand %p282, %p283
      %p285 = pneg %p284
      // Predicated region
      $region9: #{tpu_custom_call.1} parent=5 // pred_check
        _
      $region10: #{tpu_custom_call.1} parent=5 // pred_check_branch
        %287 = sbr.rel (%p284) target = $region12
      $region11: #{tpu_custom_call.1} parent=5 // pred_region
        %s288 = ssub.s32 %s19, 1
        // Predicated region
        $region13: #{tpu_custom_call.1} parent=11 // pred_check
          %p289 = pneg %p78
        $region14: #{tpu_custom_call.1} parent=11 // pred_check_branch
          %291 = sbr.rel (%p289) target = $region16
        $region15: #{tpu_custom_call.1} parent=11 // pred_region
          _
        $region16: #{tpu_custom_call.1} parent=11 // pred_fallthru
          _
        // Predicated region
        $region17: #{tpu_custom_call.1} parent=11 // pred_check
          %p292 = pneg %p99
        $region18: #{tpu_custom_call.1} parent=11 // pred_check_branch
          %294 = sbr.rel (%p292) target = $region20
        $region19: #{tpu_custom_call.1} parent=11 // pred_region
          _
        $region20: #{tpu_custom_call.1} parent=11 // pred_fallthru
          _
        // Predicated region
        $region21: #{tpu_custom_call.1} parent=11 // pred_check
          %p295 = pneg %p120
        $region22: #{tpu_custom_call.1} parent=11 // pred_check_branch
          %297 = sbr.rel (%p295) target = $region24
        $region23: #{tpu_custom_call.1} parent=11 // pred_region
          _
        $region24: #{tpu_custom_call.1} parent=11 // pred_fallthru
          _
        // Predicated region
        $region25: #{tpu_custom_call.1} parent=11 // pred_check
          %p298 = pneg %p141
        $region26: #{tpu_custom_call.1} parent=11 // pred_check_branch
          %300 = sbr.rel (%p298) target = $region28
        $region27: #{tpu_custom_call.1} parent=11 // pred_region
          _
        $region28: #{tpu_custom_call.1} parent=11 // pred_fallthru
          _
        // Predicated region
        $region29: #{tpu_custom_call.1} parent=11 // pred_check
          %p301 = pneg %p162
        $region30: #{tpu_custom_call.1} parent=11 // pred_check_branch
          %303 = sbr.rel (%p301) target = $region32
        $region31: #{tpu_custom_call.1} parent=11 // pred_region
          _
        $region32: #{tpu_custom_call.1} parent=11 // pred_fallthru
          _
        // Predicated region
        $region33: #{tpu_custom_call.1} parent=11 // pred_check
          %p304 = pneg %p183
        $region34: #{tpu_custom_call.1} parent=11 // pred_check_branch
          %306 = sbr.rel (%p304) target = $region36
        $region35: #{tpu_custom_call.1} parent=11 // pred_region
          _
        $region36: #{tpu_custom_call.1} parent=11 // pred_fallthru
          _
        // Predicated region
        $region37: #{tpu_custom_call.1} parent=11 // pred_check
          %p307 = pneg %p204
        $region38: #{tpu_custom_call.1} parent=11 // pred_check_branch
          %309 = sbr.rel (%p307) target = $region40
        $region39: #{tpu_custom_call.1} parent=11 // pred_region
          _
        $region40: #{tpu_custom_call.1} parent=11 // pred_fallthru
          _
        // Predicated region
        $region41: #{tpu_custom_call.1} parent=11 // pred_check
          %p310 = pneg %p225
        $region42: #{tpu_custom_call.1} parent=11 // pred_check_branch
          %312 = sbr.rel (%p310) target = $region44
        $region43: #{tpu_custom_call.1} parent=11 // pred_region
          _
        $region44: #{tpu_custom_call.1} parent=11 // pred_fallthru
          _
        // Predicated region
        $region45: #{tpu_custom_call.1} parent=11 // pred_check
          %p313 = pneg %p246
        $region46: #{tpu_custom_call.1} parent=11 // pred_check_branch
          %315 = sbr.rel (%p313) target = $region48
        $region47: #{tpu_custom_call.1} parent=11 // pred_region
          _
        $region48: #{tpu_custom_call.1} parent=11 // pred_fallthru
          _
      $region12: #{tpu_custom_call.1} parent=5 // pred_fallthru
        _
      %p316 = scmp.lt.s32.totalorder %s19, 2
      // Predicated region
      $region49: #{tpu_custom_call.1} parent=5 // pred_check
        %p317 = pneg %p316
      $region50: #{tpu_custom_call.1} parent=5 // pred_check_branch
        %319 = sbr.rel (%p317) target = $region52
      $region51: #{tpu_custom_call.1} parent=5 // pred_region
        // Predicated region
        $region53: #{tpu_custom_call.1} parent=51 // pred_check
          %p320 = pneg %p51
        $region54: #{tpu_custom_call.1} parent=51 // pred_check_branch
          %322 = sbr.rel (%p320) target = $region56
        $region55: #{tpu_custom_call.1} parent=51 // pred_region
          %p323 = scmp.lt.s32.totalorder %s26, 1
          %s324 = scalar_select %p323, %s26, 1
          %s325 = smul.addr %s324, 54
          %s326 = smul.addr %s325, 8
          %s327 = scalar_lea.vmem %s0, %s326
        $region56: #{tpu_custom_call.1} parent=51 // pred_fallthru
          _
      $region52: #{tpu_custom_call.1} parent=5 // pred_fallthru
        _
      %p328 = scmp.le.s32.totalorder 1, %s19
      %p329 = scmp.lt.s32.totalorder %s19, 3
      %p330 = pnand %p328, %p329
      %p331 = pneg %p330
      // Predicated region
      $region57: #{tpu_custom_call.1} parent=5 // pred_check
        _
      $region58: #{tpu_custom_call.1} parent=5 // pred_check_branch
        %333 = sbr.rel (%p330) target = $region60
      $region59: #{tpu_custom_call.1} parent=5 // pred_region
        %s334 = ssub.s32 %s19, 1
        %p335 = scmp.lt.s32.totalorder %s28, 1
        %s336 = scalar_select %p335, %s28, 1
        %s337 = smul.addr %s336, 54
        %s338 = smul.addr %s337, 8
        %s339 = scalar_lea.vmem %s0, %s338
        %p340 = pneg %p57
        %p341 = pneg %p54
        %p342 = pneg %p78
        %p343 = pneg %p75
        %p344 = pneg %p99
        %p345 = pneg %p96
        %p346 = pneg %p120
        %p347 = pneg %p117
        %p348 = pneg %p141
        %p349 = pneg %p138
        %p350 = pneg %p162
        %p351 = pneg %p159
        %p352 = pneg %p183
        %p353 = pneg %p180
        %p354 = pneg %p204
        %p355 = pneg %p201
        %p356 = pneg %p225
        %p357 = pneg %p222
        %p358 = pneg %p246
        %p359 = pneg %p243
        %p360 = pneg %p274
        %p361 = pneg %p271
        %s362 = sand.u32 %s261, 1
        %s363 = scalar_lea.sflag [#allocation4], %s362
        %s364 = sand.u32 %s261, 1
        %s365 = smul.addr %s364, 16
        %s366 = scalar_lea.vmem [#allocation3], %s365
        %p367 = scmp.lt.s32.totalorder %s28, 1
        %s368 = scalar_select %p367, %s28, 1
        %s369 = smul.addr %s368, 54
        %s370 = smul.addr %s369, 8
        %s371 = scalar_lea.vmem %s0, %s370
        %s372 = smul.u32 2, %s29
        %s374 = smul.u32 %s29, 16
        %s375 = smul.u32 %s374, 24
        %s376 = scalar_lea.vmem %s371, %s375
        %v377 = vld [vmem:[%s376] sm:$0xff]
        %v378 = vld [vmem:[%s376 + $0x8] sm:$0xff]
        %v379 = vld [vmem:[%s376 + $0x10] sm:$0xff]
        %v380 = vld [vmem:[%s376 + $0x18] sm:$0xff]
        %v381 = vld [vmem:[%s376 + $0x20] sm:$0xff]
        %v382 = vld [vmem:[%s376 + $0x28] sm:$0xff]
        %v383 = vld [vmem:[%s376 + $0x30] sm:$0xff]
        %v384 = vld [vmem:[%s376 + $0x38] sm:$0xff]
        %v385 = vld [vmem:[%s376 + $0x40] sm:$0xff]
        %v386 = vld [vmem:[%s376 + $0x48] sm:$0xff]
        %v387 = vld [vmem:[%s376 + $0x50] sm:$0xff]
        %v388 = vld [vmem:[%s376 + $0x58] sm:$0xff]
        %v389 = vld [vmem:[%s376 + $0x60] sm:$0xff]
        %v390 = vld [vmem:[%s376 + $0x68] sm:$0xff]
        %v391 = vld [vmem:[%s376 + $0x70] sm:$0xff]
        %v392 = vld [vmem:[%s376 + $0x78] sm:$0xff]
        %v393 = vld [vmem:[%s376 + $0x80] sm:$0xff]
        %v394 = vld [vmem:[%s376 + $0x88] sm:$0xff]
        %v395 = vld [vmem:[%s376 + $0x90] sm:$0xff]
        %v396 = vld [vmem:[%s376 + $0x98] sm:$0xff]
        %v397 = vld [vmem:[%s376 + $0xa0] sm:$0xff]
        %v398 = vld [vmem:[%s376 + $0xa8] sm:$0xff]
        %v399 = vld [vmem:[%s376 + $0xb0] sm:$0xff]
        %v400 = vld [vmem:[%s376 + $0xb8] sm:$0xff]
        %v401 = vld [vmem:[%s376 + $0xc0] sm:$0xff]
        %v402 = vld [vmem:[%s376 + $0xc8] sm:$0xff]
        %v403 = vld [vmem:[%s376 + $0xd0] sm:$0xff]
        %v404 = vld [vmem:[%s376 + $0xd8] sm:$0xff]
        %v405 = vld [vmem:[%s376 + $0xe0] sm:$0xff]
        %v406 = vld [vmem:[%s376 + $0xe8] sm:$0xff]
        %v407 = vld [vmem:[%s376 + $0xf0] sm:$0xff]
        %v408 = vld [vmem:[%s376 + $0xf8] sm:$0xff]
        %v409 = vld [vmem:[%s376 + $0x100] sm:$0xff]
        %v410 = vld [vmem:[%s376 + $0x108] sm:$0xff]
        %v411 = vld [vmem:[%s376 + $0x110] sm:$0xff]
        %v412 = vld [vmem:[%s376 + $0x118] sm:$0xff]
        %v413 = vld [vmem:[%s376 + $0x120] sm:$0xff]
        %v414 = vld [vmem:[%s376 + $0x128] sm:$0xff]
        %v415 = vld [vmem:[%s376 + $0x130] sm:$0xff]
        %v416 = vld [vmem:[%s376 + $0x138] sm:$0xff]
        %v417 = vld [vmem:[%s376 + $0x140] sm:$0xff]
        %v418 = vld [vmem:[%s376 + $0x148] sm:$0xff]
        %v419 = vld [vmem:[%s376 + $0x150] sm:$0xff]
        %v420 = vld [vmem:[%s376 + $0x158] sm:$0xff]
        %v421 = vld [vmem:[%s376 + $0x160] sm:$0xff]
        %v422 = vld [vmem:[%s376 + $0x168] sm:$0xff]
        %v423 = vld [vmem:[%s376 + $0x170] sm:$0xff]
        %v424 = vld [vmem:[%s376 + $0x178] sm:$0xff]
        %v425 = vld [vmem:[%s376 + $0x180] sm:$0xff]
        %v426 = vld [vmem:[%s376 + $0x188] sm:$0xff]
        %v427 = vld [vmem:[%s376 + $0x190] sm:$0xff]
        %v428 = vld [vmem:[%s376 + $0x198] sm:$0xff]
        %v429 = vld [vmem:[%s376 + $0x1a0] sm:$0xff]
        %v430 = vld [vmem:[%s376 + $0x1a8] sm:$0xff]
        %v431 = vld [vmem:[%s1] sm:$0xff]
        %vm432 = vcmask 64512
        %v434 = vsel %vm432, %v377, 0
        %v437 = vsel %vm432, %v378, 0
        %v440 = vsel %vm432, %v379, 0
        %v443 = vsel %vm432, %v380, 0
        %v446 = vsel %vm432, %v381, 0
        %v449 = vsel %vm432, %v382, 0
        %v452 = vsel %vm432, %v383, 0
        %v455 = vsel %vm432, %v384, 0
        %v458 = vsel %vm432, %v385, 0
        %v461 = vsel %vm432, %v386, 0
        %v464 = vsel %vm432, %v387, 0
        %v467 = vsel %vm432, %v388, 0
        %v470 = vsel %vm432, %v389, 0
        %v473 = vsel %vm432, %v390, 0
        %v476 = vsel %vm432, %v391, 0
        %v479 = vsel %vm432, %v392, 0
        %v482 = vsel %vm432, %v393, 0
        %v485 = vsel %vm432, %v394, 0
        %v488 = vsel %vm432, %v395, 0
        %v491 = vsel %vm432, %v396, 0
        %v494 = vsel %vm432, %v397, 0
        %v497 = vsel %vm432, %v398, 0
        %v500 = vsel %vm432, %v399, 0
        %v503 = vsel %vm432, %v400, 0
        %v506 = vsel %vm432, %v401, 0
        %v509 = vsel %vm432, %v402, 0
        %v512 = vsel %vm432, %v403, 0
        %v515 = vsel %vm432, %v404, 0
        %v518 = vsel %vm432, %v405, 0
        %v521 = vsel %vm432, %v406, 0
        %v524 = vsel %vm432, %v407, 0
        %v527 = vsel %vm432, %v408, 0
        %v530 = vsel %vm432, %v409, 0
        %v533 = vsel %vm432, %v410, 0
        %v536 = vsel %vm432, %v411, 0
        %v539 = vsel %vm432, %v412, 0
        %v542 = vsel %vm432, %v413, 0
        %v545 = vsel %vm432, %v414, 0
        %v548 = vsel %vm432, %v415, 0
        %v551 = vsel %vm432, %v416, 0
        %v554 = vsel %vm432, %v417, 0
        %v557 = vsel %vm432, %v418, 0
        %v560 = vsel %vm432, %v419, 0
        %v563 = vsel %vm432, %v420, 0
        %v566 = vsel %vm432, %v421, 0
        %v569 = vsel %vm432, %v422, 0
        %v572 = vsel %vm432, %v423, 0
        %v575 = vsel %vm432, %v424, 0
        %v578 = vsel %vm432, %v425, 0
        %v581 = vsel %vm432, %v426, 0
        %v584 = vsel %vm432, %v427, 0
        %v587 = vsel %vm432, %v428, 0
        %v590 = vsel %vm432, %v429, 0
        %v593 = vsel %vm432, %v430, 0
        %595 = vmatprep.subr.mxu0 0.0
        %596 = vmatpush1.msra.mxu0 %v431
        %597 = vmatprep.subr.mxu0 0.0
        %598 = vmatpush1.msra.mxu0 0.0
        %599 = vmatprep.subr.mxu0 0.0
        %600 = vmatpush1.msra.mxu0 0.0
        %601 = vmatprep.subr.mxu0 0.0
        %602 = vmatpush1.msra.mxu0 0.0
        %603 = vmatprep.subr.mxu0 0.0
        %604 = vmatpush1.msra.mxu0 0.0
        %605 = vmatprep.subr.mxu0 0.0
        %606 = vmatpush1.msra.mxu0 0.0
        %607 = vmatprep.subr.mxu0 0.0
        %608 = vmatpush1.msra.mxu0 0.0
        %609 = vmatprep.subr.mxu0 0.0
        %610 = vmatpush1.msra.mxu0 0.0
        %611 = vmatprep.subr.mxu0 0.0
        %612 = vmatpush1.msra.mxu0 0.0
        %613 = vmatprep.subr.mxu0 0.0
        %614 = vmatpush1.msra.mxu0 0.0
        %615 = vmatprep.subr.mxu0 0.0
        %616 = vmatpush1.msra.mxu0 0.0
        %617 = vmatprep.subr.mxu0 0.0
        %618 = vmatpush1.msra.mxu0 0.0
        %619 = vmatprep.subr.mxu0 0.0
        %620 = vmatpush1.msra.mxu0 0.0
        %621 = vmatprep.subr.mxu0 0.0
        %622 = vmatpush1.msra.mxu0 0.0
        %623 = vmatprep.subr.mxu0 0.0
        %624 = vmatpush1.msra.mxu0 0.0
        %625 = vmatprep.subr.mxu0 0.0
        %626 = vmatpush1.msra.mxu0 0.0
        %627 = vmatprep.subr.mxu0 0.0
        %628 = vmatpush1.msra.mxu0 0.0
        %629 = vmatprep.subr.mxu0 0.0
        %630 = vmatpush1.msra.mxu0 0.0
        %631 = vmatprep.subr.mxu0 0.0
        %632 = vmatpush1.msra.mxu0 0.0
        %633 = vmatprep.subr.mxu0 0.0
        %634 = vmatpush1.msra.mxu0 0.0
        %635 = vmatprep.subr.mxu0 0.0
        %636 = vmatpush1.msra.mxu0 0.0
        %637 = vmatprep.subr.mxu0 0.0
        %638 = vmatpush1.msra.mxu0 0.0
        %639 = vmatprep.subr.mxu0 0.0
        %640 = vmatpush1.msra.mxu0 0.0
        %641 = vmatprep.subr.mxu0 0.0
        %642 = vmatpush1.msra.mxu0 0.0
        %643 = vmatprep.subr.mxu0 0.0
        %644 = vmatpush1.msra.mxu0 0.0
        %645 = vmatprep.subr.mxu0 0.0
        %646 = vmatpush1.msra.mxu0 0.0
        %647 = vmatprep.subr.mxu0 0.0
        %648 = vmatpush1.msra.mxu0 0.0
        %649 = vmatprep.subr.mxu0 0.0
        %650 = vmatpush1.msra.mxu0 0.0
        %651 = vmatprep.subr.mxu0 0.0
        %652 = vmatpush1.msra.mxu0 0.0
        %653 = vmatprep.subr.mxu0 0.0
        %654 = vmatpush1.msra.mxu0 0.0
        %655 = vmatprep.subr.mxu0 0.0
        %656 = vmatpush1.msra.mxu0 0.0
        %657 = vmatprep.subr.mxu0 0.0
        %658 = vmatpush1.msra.mxu0 0.0
        %659 = vmatprep.mubr.f32.mxu0 0.0
        %660 = vmatmul.mubr.f32.gmra.mrb[0].mxu0 %v434
        %v661 = vpop.f32.mrb[0].mxu0
        %v662 = vadd.f32 0.0, %v661
        %v663 = vpop.f32.mrb[0].mxu0
        %664 = vmatprep.mubr.f32.mxu0 0.0
        %665 = vmatmul.mubr.f32.gmra.mrb[0].mxu0 %v437
        %v666 = vpop.f32.mrb[0].mxu0
        %v667 = vadd.f32 0.0, %v666
        %v668 = vpop.f32.mrb[0].mxu0
        %669 = vmatprep.mubr.f32.mxu0 0.0
        %670 = vmatmul.mubr.f32.gmra.mrb[0].mxu0 %v440
        %v671 = vpop.f32.mrb[0].mxu0
        %v672 = vadd.f32 0.0, %v671
        %v673 = vpop.f32.mrb[0].mxu0
        %674 = vmatprep.mubr.f32.mxu0 0.0
        %675 = vmatmul.mubr.f32.gmra.mrb[0].mxu0 %v443
        %v676 = vpop.f32.mrb[0].mxu0
        %v677 = vadd.f32 0.0, %v676
        %v678 = vpop.f32.mrb[0].mxu0
        %679 = vmatprep.mubr.f32.mxu0 0.0
        %680 = vmatmul.mubr.f32.gmra.mrb[0].mxu0 %v446
        %v681 = vpop.f32.mrb[0].mxu0
        %v682 = vadd.f32 0.0, %v681
        %v683 = vpop.f32.mrb[0].mxu0
        %684 = vmatprep.mubr.f32.mxu0 0.0
        %685 = vmatmul.mubr.f32.gmra.mrb[0].mxu0 %v449
        %v686 = vpop.f32.mrb[0].mxu0
        %v687 = vadd.f32 0.0, %v686
        %v688 = vpop.f32.mrb[0].mxu0
        %689 = vmatprep.mubr.f32.mxu0 0.0
        %690 = vmatmul.mubr.f32.gmra.mrb[0].mxu0 %v452
        %v691 = vpop.f32.mrb[0].mxu0
        %v692 = vadd.f32 0.0, %v691
        %v693 = vpop.f32.mrb[0].mxu0
        %694 = vmatprep.mubr.f32.mxu0 0.0
        %695 = vmatmul.mubr.f32.gmra.mrb[0].mxu0 %v455
        %v696 = vpop.f32.mrb[0].mxu0
        %v697 = vadd.f32 0.0, %v696
        %v698 = vpop.f32.mrb[0].mxu0
        %699 = vmatprep.mubr.f32.mxu0 0.0
        %700 = vmatmul.mubr.f32.gmra.mrb[0].mxu0 %v458
        %v701 = vpop.f32.mrb[0].mxu0
        %v702 = vadd.f32 0.0, %v701
        %v703 = vpop.f32.mrb[0].mxu0
        %704 = vmatprep.mubr.f32.mxu0 0.0
        %705 = vmatmul.mubr.f32.gmra.mrb[0].mxu0 %v461
        %v706 = vpop.f32.mrb[0].mxu0
        %v707 = vadd.f32 0.0, %v706
        %v708 = vpop.f32.mrb[0].mxu0
        %709 = vmatprep.mubr.f32.mxu0 0.0
        %710 = vmatmul.mubr.f32.gmra.mrb[0].mxu0 %v464
        %v711 = vpop.f32.mrb[0].mxu0
        %v712 = vadd.f32 0.0, %v711
        %v713 = vpop.f32.mrb[0].mxu0
        %714 = vmatprep.mubr.f32.mxu0 0.0
        %715 = vmatmul.mubr.f32.gmra.mrb[0].mxu0 %v467
        %v716 = vpop.f32.mrb[0].mxu0
        %v717 = vadd.f32 0.0, %v716
        %v718 = vpop.f32.mrb[0].mxu0
        %719 = vmatprep.mubr.f32.mxu0 0.0
        %720 = vmatmul.mubr.f32.gmra.mrb[0].mxu0 %v470
        %v721 = vpop.f32.mrb[0].mxu0
        %v722 = vadd.f32 0.0, %v721
        %v723 = vpop.f32.mrb[0].mxu0
        %724 = vmatprep.mubr.f32.mxu0 0.0
        %725 = vmatmul.mubr.f32.gmra.mrb[0].mxu0 %v473
        %v726 = vpop.f32.mrb[0].mxu0
        %v727 = vadd.f32 0.0, %v726
        %v728 = vpop.f32.mrb[0].mxu0
        %729 = vmatprep.mubr.f32.mxu0 0.0
        %730 = vmatmul.mubr.f32.gmra.mrb[0].mxu0 %v476
        %v731 = vpop.f32.mrb[0].mxu0
        %v732 = vadd.f32 0.0, %v731
        %v733 = vpop.f32.mrb[0].mxu0
        %734 = vmatprep.mubr.f32.mxu0 0.0
        %735 = vmatmul.mubr.f32.gmra.mrb[0].mxu0 %v479
        %v736 = vpop.f32.mrb[0].mxu0
        %v737 = vadd.f32 0.0, %v736
        %v738 = vpop.f32.mrb[0].mxu0
        %739 = vmatprep.mubr.f32.mxu0 0.0
        %740 = vmatmul.mubr.f32.gmra.mrb[0].mxu0 %v482
        %v741 = vpop.f32.mrb[0].mxu0
        %v742 = vadd.f32 0.0, %v741
        %v743 = vpop.f32.mrb[0].mxu0
        %744 = vmatprep.mubr.f32.mxu0 0.0
        %745 = vmatmul.mubr.f32.gmra.mrb[0].mxu0 %v485
        %v746 = vpop.f32.mrb[0].mxu0
        %v747 = vadd.f32 0.0, %v746
        %v748 = vpop.f32.mrb[0].mxu0
        %749 = vmatprep.mubr.f32.mxu0 0.0
        %750 = vmatmul.mubr.f32.gmra.mrb[0].mxu0 %v488
        %v751 = vpop.f32.mrb[0].mxu0
        %v752 = vadd.f32 0.0, %v751
        %v753 = vpop.f32.mrb[0].mxu0
        %754 = vmatprep.mubr.f32.mxu0 0.0
        %755 = vmatmul.mubr.f32.gmra.mrb[0].mxu0 %v491
        %v756 = vpop.f32.mrb[0].mxu0
        %v757 = vadd.f32 0.0, %v756
        %v758 = vpop.f32.mrb[0].mxu0
        %759 = vmatprep.mubr.f32.mxu0 0.0
        %760 = vmatmul.mubr.f32.gmra.mrb[0].mxu0 %v494
        %v761 = vpop.f32.mrb[0].mxu0
        %v762 = vadd.f32 0.0, %v761
        %v763 = vpop.f32.mrb[0].mxu0
        %764 = vmatprep.mubr.f32.mxu0 0.0
        %765 = vmatmul.mubr.f32.gmra.mrb[0].mxu0 %v497
        %v766 = vpop.f32.mrb[0].mxu0
        %v767 = vadd.f32 0.0, %v766
        %v768 = vpop.f32.mrb[0].mxu0
        %769 = vmatprep.mubr.f32.mxu0 0.0
        %770 = vmatmul.mubr.f32.gmra.mrb[0].mxu0 %v500
        %v771 = vpop.f32.mrb[0].mxu0
        %v772 = vadd.f32 0.0, %v771
        %v773 = vpop.f32.mrb[0].mxu0
        %774 = vmatprep.mubr.f32.mxu0 0.0
        %775 = vmatmul.mubr.f32.gmra.mrb[0].mxu0 %v503
        %v776 = vpop.f32.mrb[0].mxu0
        %v777 = vadd.f32 0.0, %v776
        %v778 = vpop.f32.mrb[0].mxu0
        %779 = vmatprep.mubr.f32.mxu0 0.0
        %780 = vmatmul.mubr.f32.gmra.mrb[0].mxu0 %v506
        %v781 = vpop.f32.mrb[0].mxu0
        %v782 = vadd.f32 0.0, %v781
        %v783 = vpop.f32.mrb[0].mxu0
        %784 = vmatprep.mubr.f32.mxu0 0.0
        %785 = vmatmul.mubr.f32.gmra.mrb[0].mxu0 %v509
        %v786 = vpop.f32.mrb[0].mxu0
        %v787 = vadd.f32 0.0, %v786
        %v788 = vpop.f32.mrb[0].mxu0
        %789 = vmatprep.mubr.f32.mxu0 0.0
        %790 = vmatmul.mubr.f32.gmra.mrb[0].mxu0 %v512
        %v791 = vpop.f32.mrb[0].mxu0
        %v792 = vadd.f32 0.0, %v791
        %v793 = vpop.f32.mrb[0].mxu0
        %794 = vmatprep.mubr.f32.mxu0 0.0
        %795 = vmatmul.mubr.f32.gmra.mrb[0].mxu0 %v515
        %v796 = vpop.f32.mrb[0].mxu0
        %v797 = vadd.f32 0.0, %v796
        %v798 = vpop.f32.mrb[0].mxu0
        %799 = vmatprep.mubr.f32.mxu0 0.0
        %800 = vmatmul.mubr.f32.gmra.mrb[0].mxu0 %v518
        %v801 = vpop.f32.mrb[0].mxu0
        %v802 = vadd.f32 0.0, %v801
        %v803 = vpop.f32.mrb[0].mxu0
        %804 = vmatprep.mubr.f32.mxu0 0.0
        %805 = vmatmul.mubr.f32.gmra.mrb[0].mxu0 %v521
        %v806 = vpop.f32.mrb[0].mxu0
        %v807 = vadd.f32 0.0, %v806
        %v808 = vpop.f32.mrb[0].mxu0
        %809 = vmatprep.mubr.f32.mxu0 0.0
        %810 = vmatmul.mubr.f32.gmra.mrb[0].mxu0 %v524
        %v811 = vpop.f32.mrb[0].mxu0
        %v812 = vadd.f32 0.0, %v811
        %v813 = vpop.f32.mrb[0].mxu0
        %814 = vmatprep.mubr.f32.mxu0 0.0
        %815 = vmatmul.mubr.f32.gmra.mrb[0].mxu0 %v527
        %v816 = vpop.f32.mrb[0].mxu0
        %v817 = vadd.f32 0.0, %v816
        %v818 = vpop.f32.mrb[0].mxu0
        %819 = vmatprep.mubr.f32.mxu0 0.0
        %820 = vmatmul.mubr.f32.gmra.mrb[0].mxu0 %v530
        %v821 = vpop.f32.mrb[0].mxu0
        %v822 = vadd.f32 0.0, %v821
        %v823 = vpop.f32.mrb[0].mxu0
        %824 = vmatprep.mubr.f32.mxu0 0.0
        %825 = vmatmul.mubr.f32.gmra.mrb[0].mxu0 %v533
        %v826 = vpop.f32.mrb[0].mxu0
        %v827 = vadd.f32 0.0, %v826
        %v828 = vpop.f32.mrb[0].mxu0
        %829 = vmatprep.mubr.f32.mxu0 0.0
        %830 = vmatmul.mubr.f32.gmra.mrb[0].mxu0 %v536
        %v831 = vpop.f32.mrb[0].mxu0
        %v832 = vadd.f32 0.0, %v831
        %v833 = vpop.f32.mrb[0].mxu0
        %834 = vmatprep.mubr.f32.mxu0 0.0
        %835 = vmatmul.mubr.f32.gmra.mrb[0].mxu0 %v539
        %v836 = vpop.f32.mrb[0].mxu0
        %v837 = vadd.f32 0.0, %v836
        %v838 = vpop.f32.mrb[0].mxu0
        %839 = vmatprep.mubr.f32.mxu0 0.0
        %840 = vmatmul.mubr.f32.gmra.mrb[0].mxu0 %v542
        %v841 = vpop.f32.mrb[0].mxu0
        %v842 = vadd.f32 0.0, %v841
        %v843 = vpop.f32.mrb[0].mxu0
        %844 = vmatprep.mubr.f32.mxu0 0.0
        %845 = vmatmul.mubr.f32.gmra.mrb[0].mxu0 %v545
        %v846 = vpop.f32.mrb[0].mxu0
        %v847 = vadd.f32 0.0, %v846
        %v848 = vpop.f32.mrb[0].mxu0
        %849 = vmatprep.mubr.f32.mxu0 0.0
        %850 = vmatmul.mubr.f32.gmra.mrb[0].mxu0 %v548
        %v851 = vpop.f32.mrb[0].mxu0
        %v852 = vadd.f32 0.0, %v851
        %v853 = vpop.f32.mrb[0].mxu0
        %854 = vmatprep.mubr.f32.mxu0 0.0
        %855 = vmatmul.mubr.f32.gmra.mrb[0].mxu0 %v551
        %v856 = vpop.f32.mrb[0].mxu0
        %v857 = vadd.f32 0.0, %v856
        %v858 = vpop.f32.mrb[0].mxu0
        %859 = vmatprep.mubr.f32.mxu0 0.0
        %860 = vmatmul.mubr.f32.gmra.mrb[0].mxu0 %v554
        %v861 = vpop.f32.mrb[0].mxu0
        %v862 = vadd.f32 0.0, %v861
        %v863 = vpop.f32.mrb[0].mxu0
        %864 = vmatprep.mubr.f32.mxu0 0.0
        %865 = vmatmul.mubr.f32.gmra.mrb[0].mxu0 %v557
        %v866 = vpop.f32.mrb[0].mxu0
        %v867 = vadd.f32 0.0, %v866
        %v868 = vpop.f32.mrb[0].mxu0
        %869 = vmatprep.mubr.f32.mxu0 0.0
        %870 = vmatmul.mubr.f32.gmra.mrb[0].mxu0 %v560
        %v871 = vpop.f32.mrb[0].mxu0
        %v872 = vadd.f32 0.0, %v871
        %v873 = vpop.f32.mrb[0].mxu0
        %874 = vmatprep.mubr.f32.mxu0 0.0
        %875 = vmatmul.mubr.f32.gmra.mrb[0].mxu0 %v563
        %v876 = vpop.f32.mrb[0].mxu0
        %v877 = vadd.f32 0.0, %v876
        %v878 = vpop.f32.mrb[0].mxu0
        %879 = vmatprep.mubr.f32.mxu0 0.0
        %880 = vmatmul.mubr.f32.gmra.mrb[0].mxu0 %v566
        %v881 = vpop.f32.mrb[0].mxu0
        %v882 = vadd.f32 0.0, %v881
        %v883 = vpop.f32.mrb[0].mxu0
        %884 = vmatprep.mubr.f32.mxu0 0.0
        %885 = vmatmul.mubr.f32.gmra.mrb[0].mxu0 %v569
        %v886 = vpop.f32.mrb[0].mxu0
        %v887 = vadd.f32 0.0, %v886
        %v888 = vpop.f32.mrb[0].mxu0
        %889 = vmatprep.mubr.f32.mxu0 0.0
        %890 = vmatmul.mubr.f32.gmra.mrb[0].mxu0 %v572
        %v891 = vpop.f32.mrb[0].mxu0
        %v892 = vadd.f32 0.0, %v891
        %v893 = vpop.f32.mrb[0].mxu0
        %894 = vmatprep.mubr.f32.mxu0 0.0
        %895 = vmatmul.mubr.f32.gmra.mrb[0].mxu0 %v575
        %v896 = vpop.f32.mrb[0].mxu0
        %v897 = vadd.f32 0.0, %v896
        %v898 = vpop.f32.mrb[0].mxu0
        %899 = vmatprep.mubr.f32.mxu0 0.0
        %900 = vmatmul.mubr.f32.gmra.mrb[0].mxu0 %v578
        %v901 = vpop.f32.mrb[0].mxu0
        %v902 = vadd.f32 0.0, %v901
        %v903 = vpop.f32.mrb[0].mxu0
        %904 = vmatprep.mubr.f32.mxu0 0.0
        %905 = vmatmul.mubr.f32.gmra.mrb[0].mxu0 %v581
        %v906 = vpop.f32.mrb[0].mxu0
        %v907 = vadd.f32 0.0, %v906
        %v908 = vpop.f32.mrb[0].mxu0
        %909 = vmatprep.mubr.f32.mxu0 0.0
        %910 = vmatmul.mubr.f32.gmra.mrb[0].mxu0 %v584
        %v911 = vpop.f32.mrb[0].mxu0
        %v912 = vadd.f32 0.0, %v911
        %v913 = vpop.f32.mrb[0].mxu0
        %914 = vmatprep.mubr.f32.mxu0 0.0
        %915 = vmatmul.mubr.f32.gmra.mrb[0].mxu0 %v587
        %v916 = vpop.f32.mrb[0].mxu0
        %v917 = vadd.f32 0.0, %v916
        %v918 = vpop.f32.mrb[0].mxu0
        %919 = vmatprep.mubr.f32.mxu0 0.0
        %920 = vmatmul.mubr.f32.gmra.mrb[0].mxu0 %v590
        %v921 = vpop.f32.mrb[0].mxu0
        %v922 = vadd.f32 0.0, %v921
        %v923 = vpop.f32.mrb[0].mxu0
        %924 = vmatprep.mubr.f32.mxu0 0.0
        %925 = vmatmul.mubr.f32.gmra.mrb[0].mxu0 %v593
        %v926 = vpop.f32.mrb[0].mxu0
        %v927 = vadd.f32 0.0, %v926
        %v928 = vpop.f32.mrb[0].mxu0
        %929 = vdwg.mxu0
        %v930 = vld [vmem:[%s2] sm:$0x1]
        %v932 = vlaneseq
        %v933 = vshrl.u32 %v932, 7
        %v934 = vsub.s32 0, %v933
        %v935 = vrot.slane %v930, %v934
        %v937 = vmul.f32 %v662, %v935
        %v938 = vmul.f32 %v667, %v935
        %v939 = vmul.f32 %v672, %v935
        %v940 = vmul.f32 %v677, %v935
        %v941 = vmul.f32 %v682, %v935
        %v942 = vmul.f32 %v687, %v935
        %v943 = vmul.f32 %v692, %v935
        %v944 = vmul.f32 %v697, %v935
        %v945 = vmul.f32 %v702, %v935
        %v946 = vmul.f32 %v707, %v935
        %v947 = vmul.f32 %v712, %v935
        %v948 = vmul.f32 %v717, %v935
        %v949 = vmul.f32 %v722, %v935
        %v950 = vmul.f32 %v727, %v935
        %v951 = vmul.f32 %v732, %v935
        %v952 = vmul.f32 %v737, %v935
        %v953 = vmul.f32 %v742, %v935
        %v954 = vmul.f32 %v747, %v935
        %v955 = vmul.f32 %v752, %v935
        %v956 = vmul.f32 %v757, %v935
        %v957 = vmul.f32 %v762, %v935
        %v958 = vmul.f32 %v767, %v935
        %v959 = vmul.f32 %v772, %v935
        %v960 = vmul.f32 %v777, %v935
        %v961 = vmul.f32 %v782, %v935
        %v962 = vmul.f32 %v787, %v935
        %v963 = vmul.f32 %v792, %v935
        %v964 = vmul.f32 %v797, %v935
        %v965 = vmul.f32 %v802, %v935
        %v966 = vmul.f32 %v807, %v935
        %v967 = vmul.f32 %v812, %v935
        %v968 = vmul.f32 %v817, %v935
        %v969 = vmul.f32 %v822, %v935
        %v970 = vmul.f32 %v827, %v935
        %v971 = vmul.f32 %v832, %v935
        %v972 = vmul.f32 %v837, %v935
        %v973 = vmul.f32 %v842, %v935
        %v974 = vmul.f32 %v847, %v935
        %v975 = vmul.f32 %v852, %v935
        %v976 = vmul.f32 %v857, %v935
        %v977 = vmul.f32 %v862, %v935
        %v978 = vmul.f32 %v867, %v935
        %v979 = vmul.f32 %v872, %v935
        %v980 = vmul.f32 %v877, %v935
        %v981 = vmul.f32 %v882, %v935
        %v982 = vmul.f32 %v887, %v935
        %v983 = vmul.f32 %v892, %v935
        %v984 = vmul.f32 %v897, %v935
        %v985 = vmul.f32 %v902, %v935
        %v986 = vmul.f32 %v907, %v935
        %v987 = vmul.f32 %v912, %v935
        %v988 = vmul.f32 %v917, %v935
        %v989 = vmul.f32 %v922, %v935
        %v990 = vmul.f32 %v927, %v935
        %v991 = vld [vmem:[%s3] sm:$0x1]
        %v993 = vlaneseq
        %v994 = vshrl.u32 %v993, 7
        %v995 = vsub.s32 0, %v994
        %v996 = vrot.slane %v991, %v995
        %v998 = vadd.f32 %v937, %v996
        %v999 = vadd.f32 %v938, %v996
        %v1000 = vadd.f32 %v939, %v996
        %v1001 = vadd.f32 %v940, %v996
        %v1002 = vadd.f32 %v941, %v996
        %v1003 = vadd.f32 %v942, %v996
        %v1004 = vadd.f32 %v943, %v996
        %v1005 = vadd.f32 %v944, %v996
        %v1006 = vadd.f32 %v945, %v996
        %v1007 = vadd.f32 %v946, %v996
        %v1008 = vadd.f32 %v947, %v996
        %v1009 = vadd.f32 %v948, %v996
        %v1010 = vadd.f32 %v949, %v996
        %v1011 = vadd.f32 %v950, %v996
        %v1012 = vadd.f32 %v951, %v996
        %v1013 = vadd.f32 %v952, %v996
        %v1014 = vadd.f32 %v953, %v996
        %v1015 = vadd.f32 %v954, %v996
        %v1016 = vadd.f32 %v955, %v996
        %v1017 = vadd.f32 %v956, %v996
        %v1018 = vadd.f32 %v957, %v996
        %v1019 = vadd.f32 %v958, %v996
        %v1020 = vadd.f32 %v959, %v996
        %v1021 = vadd.f32 %v960, %v996
        %v1022 = vadd.f32 %v961, %v996
        %v1023 = vadd.f32 %v962, %v996
        %v1024 = vadd.f32 %v963, %v996
        %v1025 = vadd.f32 %v964, %v996
        %v1026 = vadd.f32 %v965, %v996
        %v1027 = vadd.f32 %v966, %v996
        %v1028 = vadd.f32 %v967, %v996
        %v1029 = vadd.f32 %v968, %v996
        %v1030 = vadd.f32 %v969, %v996
        %v1031 = vadd.f32 %v970, %v996
        %v1032 = vadd.f32 %v971, %v996
        %v1033 = vadd.f32 %v972, %v996
        %v1034 = vadd.f32 %v973, %v996
        %v1035 = vadd.f32 %v974, %v996
        %v1036 = vadd.f32 %v975, %v996
        %v1037 = vadd.f32 %v976, %v996
        %v1038 = vadd.f32 %v977, %v996
        %v1039 = vadd.f32 %v978, %v996
        %v1040 = vadd.f32 %v979, %v996
        %v1041 = vadd.f32 %v980, %v996
        %v1042 = vadd.f32 %v981, %v996
        %v1043 = vadd.f32 %v982, %v996
        %v1044 = vadd.f32 %v983, %v996
        %v1045 = vadd.f32 %v984, %v996
        %v1046 = vadd.f32 %v985, %v996
        %v1047 = vadd.f32 %v986, %v996
        %v1048 = vadd.f32 %v987, %v996
        %v1049 = vadd.f32 %v988, %v996
        %v1050 = vadd.f32 %v989, %v996
        %v1051 = vadd.f32 %v990, %v996
        %v1052 = vmax.f32 %v998, 0.0
        %v1053 = vmax.f32 %v999, 0.0
        %v1054 = vmax.f32 %v1000, 0.0
        %v1055 = vmax.f32 %v1001, 0.0
        %v1056 = vmax.f32 %v1002, 0.0
        %v1057 = vmax.f32 %v1003, 0.0
        %v1058 = vmax.f32 %v1004, 0.0
        %v1059 = vmax.f32 %v1005, 0.0
        %v1060 = vmax.f32 %v1006, 0.0
        %v1061 = vmax.f32 %v1007, 0.0
        %v1062 = vmax.f32 %v1008, 0.0
        %v1063 = vmax.f32 %v1009, 0.0
        %v1064 = vmax.f32 %v1010, 0.0
        %v1065 = vmax.f32 %v1011, 0.0
        %v1066 = vmax.f32 %v1012, 0.0
        %v1067 = vmax.f32 %v1013, 0.0
        %v1068 = vmax.f32 %v1014, 0.0
        %v1069 = vmax.f32 %v1015, 0.0
        %v1070 = vmax.f32 %v1016, 0.0
        %v1071 = vmax.f32 %v1017, 0.0
        %v1072 = vmax.f32 %v1018, 0.0
        %v1073 = vmax.f32 %v1019, 0.0
        %v1074 = vmax.f32 %v1020, 0.0
        %v1075 = vmax.f32 %v1021, 0.0
        %v1076 = vmax.f32 %v1022, 0.0
        %v1077 = vmax.f32 %v1023, 0.0
        %v1078 = vmax.f32 %v1024, 0.0
        %v1079 = vmax.f32 %v1025, 0.0
        %v1080 = vmax.f32 %v1026, 0.0
        %v1081 = vmax.f32 %v1027, 0.0
        %v1082 = vmax.f32 %v1028, 0.0
        %v1083 = vmax.f32 %v1029, 0.0
        %v1084 = vmax.f32 %v1030, 0.0
        %v1085 = vmax.f32 %v1031, 0.0
        %v1086 = vmax.f32 %v1032, 0.0
        %v1087 = vmax.f32 %v1033, 0.0
        %v1088 = vmax.f32 %v1034, 0.0
        %v1089 = vmax.f32 %v1035, 0.0
        %v1090 = vmax.f32 %v1036, 0.0
        %v1091 = vmax.f32 %v1037, 0.0
        %v1092 = vmax.f32 %v1038, 0.0
        %v1093 = vmax.f32 %v1039, 0.0
        %v1094 = vmax.f32 %v1040, 0.0
        %v1095 = vmax.f32 %v1041, 0.0
        %v1096 = vmax.f32 %v1042, 0.0
        %v1097 = vmax.f32 %v1043, 0.0
        %v1098 = vmax.f32 %v1044, 0.0
        %v1099 = vmax.f32 %v1045, 0.0
        %v1100 = vmax.f32 %v1046, 0.0
        %v1101 = vmax.f32 %v1047, 0.0
        %v1102 = vmax.f32 %v1048, 0.0
        %v1103 = vmax.f32 %v1049, 0.0
        %v1104 = vmax.f32 %v1050, 0.0
        %v1105 = vmax.f32 %v1051, 0.0
        %1106 = vst [vmem:[#allocation2] sm:$0xff] %v1052
        %1107 = vst [vmem:[#allocation2 + $0x8] sm:$0xff] %v1053
        %1108 = vst [vmem:[#allocation2 + $0x10] sm:$0xff] %v1054
        %1109 = vst [vmem:[#allocation2 + $0x18] sm:$0xff] %v1055
        %1110 = vst [vmem:[#allocation2 + $0x20] sm:$0xff] %v1056
        %1111 = vst [vmem:[#allocation2 + $0x28] sm:$0xff] %v1057
        %1112 = vst [vmem:[#allocation2 + $0x30] sm:$0xff] %v1058
        %1113 = vst [vmem:[#allocation2 + $0x38] sm:$0xff] %v1059
        %1114 = vst [vmem:[#allocation2 + $0x40] sm:$0xff] %v1060
        %1115 = vst [vmem:[#allocation2 + $0x48] sm:$0xff] %v1061
        %1116 = vst [vmem:[#allocation2 + $0x50] sm:$0xff] %v1062
        %1117 = vst [vmem:[#allocation2 + $0x58] sm:$0xff] %v1063
        %1118 = vst [vmem:[#allocation2 + $0x60] sm:$0xff] %v1064
        %1119 = vst [vmem:[#allocation2 + $0x68] sm:$0xff] %v1065
        %1120 = vst [vmem:[#allocation2 + $0x70] sm:$0xff] %v1066
        %1121 = vst [vmem:[#allocation2 + $0x78] sm:$0xff] %v1067
        %1122 = vst [vmem:[#allocation2 + $0x80] sm:$0xff] %v1068
        %1123 = vst [vmem:[#allocation2 + $0x88] sm:$0xff] %v1069
        %1124 = vst [vmem:[#allocation2 + $0x90] sm:$0xff] %v1070
        %1125 = vst [vmem:[#allocation2 + $0x98] sm:$0xff] %v1071
        %1126 = vst [vmem:[#allocation2 + $0xa0] sm:$0xff] %v1072
        %1127 = vst [vmem:[#allocation2 + $0xa8] sm:$0xff] %v1073
        %1128 = vst [vmem:[#allocation2 + $0xb0] sm:$0xff] %v1074
        %1129 = vst [vmem:[#allocation2 + $0xb8] sm:$0xff] %v1075
        %1130 = vst [vmem:[#allocation2 + $0xc0] sm:$0xff] %v1076
        %1131 = vst [vmem:[#allocation2 + $0xc8] sm:$0xff] %v1077
        %1132 = vst [vmem:[#allocation2 + $0xd0] sm:$0xff] %v1078
        %1133 = vst [vmem:[#allocation2 + $0xd8] sm:$0xff] %v1079
        %1134 = vst [vmem:[#allocation2 + $0xe0] sm:$0xff] %v1080
        %1135 = vst [vmem:[#allocation2 + $0xe8] sm:$0xff] %v1081
        %1136 = vst [vmem:[#allocation2 + $0xf0] sm:$0xff] %v1082
        %1137 = vst [vmem:[#allocation2 + $0xf8] sm:$0xff] %v1083
        %1138 = vst [vmem:[#allocation2 + $0x100] sm:$0xff] %v1084
        %1139 = vst [vmem:[#allocation2 + $0x108] sm:$0xff] %v1085
        %1140 = vst [vmem:[#allocation2 + $0x110] sm:$0xff] %v1086
        %1141 = vst [vmem:[#allocation2 + $0x118] sm:$0xff] %v1087
        %1142 = vst [vmem:[#allocation2 + $0x120] sm:$0xff] %v1088
        %1143 = vst [vmem:[#allocation2 + $0x128] sm:$0xff] %v1089
        %1144 = vst [vmem:[#allocation2 + $0x130] sm:$0xff] %v1090
        %1145 = vst [vmem:[#allocation2 + $0x138] sm:$0xff] %v1091
        %1146 = vst [vmem:[#allocation2 + $0x140] sm:$0xff] %v1092
        %1147 = vst [vmem:[#allocation2 + $0x148] sm:$0xff] %v1093
        %1148 = vst [vmem:[#allocation2 + $0x150] sm:$0xff] %v1094
        %1149 = vst [vmem:[#allocation2 + $0x158] sm:$0xff] %v1095
        %1150 = vst [vmem:[#allocation2 + $0x160] sm:$0xff] %v1096
        %1151 = vst [vmem:[#allocation2 + $0x168] sm:$0xff] %v1097
        %1152 = vst [vmem:[#allocation2 + $0x170] sm:$0xff] %v1098
        %1153 = vst [vmem:[#allocation2 + $0x178] sm:$0xff] %v1099
        %1154 = vst [vmem:[#allocation2 + $0x180] sm:$0xff] %v1100
        %1155 = vst [vmem:[#allocation2 + $0x188] sm:$0xff] %v1101
        %1156 = vst [vmem:[#allocation2 + $0x190] sm:$0xff] %v1102
        %1157 = vst [vmem:[#allocation2 + $0x198] sm:$0xff] %v1103
        %1158 = vst [vmem:[#allocation2 + $0x1a0] sm:$0xff] %v1104
        %1159 = vst [vmem:[#allocation2 + $0x1a8] sm:$0xff] %v1105
        %1160 = vst [vmem:[#allocation2] sm:$0x1] 0.0
        %1161 = vst [vmem:[#allocation2 + $0x18] sm:$0x1] 0.0
        %1162 = vst [vmem:[#allocation2 + $0x30] sm:$0x1] 0.0
        %1163 = vst [vmem:[#allocation2 + $0x48] sm:$0x1] 0.0
        %1164 = vst [vmem:[#allocation2 + $0x60] sm:$0x1] 0.0
        %1165 = vst [vmem:[#allocation2 + $0x78] sm:$0x1] 0.0
        %1166 = vst [vmem:[#allocation2 + $0x90] sm:$0x1] 0.0
        %1167 = vst [vmem:[#allocation2 + $0xa8] sm:$0x1] 0.0
        %1168 = vst [vmem:[#allocation2 + $0xc0] sm:$0x1] 0.0
        %1169 = vst [vmem:[#allocation2 + $0xd8] sm:$0x1] 0.0
        %1170 = vst [vmem:[#allocation2 + $0xf0] sm:$0x1] 0.0
        %1171 = vst [vmem:[#allocation2 + $0x108] sm:$0x1] 0.0
        %1172 = vst [vmem:[#allocation2 + $0x120] sm:$0x1] 0.0
        %1173 = vst [vmem:[#allocation2 + $0x138] sm:$0x1] 0.0
        %1174 = vst [vmem:[#allocation2 + $0x150] sm:$0x1] 0.0
        %1175 = vst [vmem:[#allocation2 + $0x168] sm:$0x1] 0.0
        %1176 = vst [vmem:[#allocation2 + $0x180] sm:$0x1] 0.0
        %1177 = vst [vmem:[#allocation2 + $0x198] sm:$0x1] 0.0
        %1178 = vst [vmem:[#allocation2 + $0x11] sm:$0x7f] 0.0
        %1179 = vst [vmem:[#allocation2 + $0x29] sm:$0x7f] 0.0
        %1180 = vst [vmem:[#allocation2 + $0x41] sm:$0x7f] 0.0
        %1181 = vst [vmem:[#allocation2 + $0x59] sm:$0x7f] 0.0
        %1182 = vst [vmem:[#allocation2 + $0x71] sm:$0x7f] 0.0
        %1183 = vst [vmem:[#allocation2 + $0x89] sm:$0x7f] 0.0
        %1184 = vst [vmem:[#allocation2 + $0xa1] sm:$0x7f] 0.0
        %1185 = vst [vmem:[#allocation2 + $0xb9] sm:$0x7f] 0.0
        %1186 = vst [vmem:[#allocation2 + $0xd1] sm:$0x7f] 0.0
        %1187 = vst [vmem:[#allocation2 + $0xe9] sm:$0x7f] 0.0
        %1188 = vst [vmem:[#allocation2 + $0x101] sm:$0x7f] 0.0
        %1189 = vst [vmem:[#allocation2 + $0x119] sm:$0x7f] 0.0
        %1190 = vst [vmem:[#allocation2 + $0x131] sm:$0x7f] 0.0
        %1191 = vst [vmem:[#allocation2 + $0x149] sm:$0x7f] 0.0
        %1192 = vst [vmem:[#allocation2 + $0x161] sm:$0x7f] 0.0
        %1193 = vst [vmem:[#allocation2 + $0x179] sm:$0x7f] 0.0
        %1194 = vst [vmem:[#allocation2 + $0x191] sm:$0x7f] 0.0
        %1195 = vst [vmem:[#allocation2 + $0x1a9] sm:$0x7f] 0.0
        %p1196 = scmp.eq.s32.totalorder %s29, 0
        // Predicated region
        $region61: #{tpu_custom_call.1} parent=59 // pred_check
          %p1197 = pneg %p1196
        $region62: #{tpu_custom_call.1} parent=59 // pred_check_branch
          %1199 = sbr.rel (%p1197) target = $region64
        $region63: #{tpu_custom_call.1} parent=59 // pred_region
          %1200 = vst [vmem:[#allocation2] sm:$0xff] 0.0
          %1201 = vst [vmem:[#allocation2 + $0x8] sm:$0xff] 0.0
          %1202 = vst [vmem:[#allocation2 + $0x10] sm:$0xff] 0.0
          %s1203 = scalar_lea.vmem [#allocation2], 408
          %1204 = vst [vmem:[%s1203] sm:$0xff] 0.0
          %1205 = vst [vmem:[%s1203 + $0x8] sm:$0xff] 0.0
          %1206 = vst [vmem:[%s1203 + $0x10] sm:$0xff] 0.0
        $region64: #{tpu_custom_call.1} parent=59 // pred_fallthru
          _
        %v1207 = vld [vmem:[%s4] sm:$0xff]
        %v1208 = vld [vmem:[%s4 + $0x8] sm:$0x1]
        %v1209 = vld [vmem:[#allocation2] sm:$0xff]
        %v1210 = vld [vmem:[#allocation2 + $0x8] sm:$0xff]
        %v1211 = vld [vmem:[#allocation2 + $0x10] sm:$0xff]
        %v1212 = vld [vmem:[#allocation2 + $0x18] sm:$0xff]
        %v1213 = vld [vmem:[#allocation2 + $0x20] sm:$0xff]
        %v1214 = vld [vmem:[#allocation2 + $0x28] sm:$0xff]
        %v1215 = vld [vmem:[#allocation2 + $0x30] sm:$0xff]
        %v1216 = vld [vmem:[#allocation2 + $0x38] sm:$0xff]
        %v1217 = vld [vmem:[#allocation2 + $0x40] sm:$0xff]
        %v1218 = vld [vmem:[#allocation2 + $0x48] sm:$0xff]
        %v1219 = vld [vmem:[#allocation2 + $0x50] sm:$0xff]
        %v1220 = vld [vmem:[#allocation2 + $0x58] sm:$0xff]
        %v1221 = vld [vmem:[#allocation2 + $0x60] sm:$0xff]
        %v1222 = vld [vmem:[#allocation2 + $0x68] sm:$0xff]
        %v1223 = vld [vmem:[#allocation2 + $0x70] sm:$0xff]
        %v1224 = vld [vmem:[#allocation2 + $0x78] sm:$0xff]
        %v1225 = vld [vmem:[#allocation2 + $0x80] sm:$0xff]
        %v1226 = vld [vmem:[#allocation2 + $0x88] sm:$0xff]
        %v1227 = vld [vmem:[#allocation2 + $0x90] sm:$0xff]
        %v1228 = vld [vmem:[#allocation2 + $0x98] sm:$0xff]
        %v1229 = vld [vmem:[#allocation2 + $0xa0] sm:$0xff]
        %v1230 = vld [vmem:[#allocation2 + $0xa8] sm:$0xff]
        %v1231 = vld [vmem:[#allocation2 + $0xb0] sm:$0xff]
        %v1232 = vld [vmem:[#allocation2 + $0xb8] sm:$0xff]
        %v1233 = vld [vmem:[#allocation2 + $0xc0] sm:$0xff]
        %v1234 = vld [vmem:[#allocation2 + $0xc8] sm:$0xff]
        %v1235 = vld [vmem:[#allocation2 + $0xd0] sm:$0xff]
        %v1236 = vld [vmem:[#allocation2 + $0xd8] sm:$0xff]
        %v1237 = vld [vmem:[#allocation2 + $0xe0] sm:$0xff]
        %v1238 = vld [vmem:[#allocation2 + $0xe8] sm:$0xff]
        %v1239 = vld [vmem:[#allocation2 + $0xf0] sm:$0xff]
        %v1240 = vld [vmem:[#allocation2 + $0xf8] sm:$0xff]
        %v1241 = vld [vmem:[#allocation2 + $0x100] sm:$0xff]
        %v1242 = vld [vmem:[#allocation2 + $0x108] sm:$0xff]
        %v1243 = vld [vmem:[#allocation2 + $0x110] sm:$0xff]
        %v1244 = vld [vmem:[#allocation2 + $0x118] sm:$0xff]
        %v1245 = vld [vmem:[#allocation2 + $0x120] sm:$0xff]
        %v1246 = vld [vmem:[#allocation2 + $0x128] sm:$0xff]
        %v1247 = vld [vmem:[#allocation2 + $0x130] sm:$0xff]
        %v1248 = vld [vmem:[#allocation2 + $0x138] sm:$0xff]
        %v1249 = vld [vmem:[#allocation2 + $0x140] sm:$0xff]
        %v1250 = vld [vmem:[#allocation2 + $0x148] sm:$0xff]
        %v1251 = vld [vmem:[#allocation2 + $0x150] sm:$0xff]
        %v1252 = vld [vmem:[#allocation2 + $0x158] sm:$0xff]
        %v1253 = vld [vmem:[#allocation2 + $0x160] sm:$0xff]
        %v1254 = vld [vmem:[#allocation2 + $0x168] sm:$0xff]
        %v1255 = vld [vmem:[#allocation2 + $0x170] sm:$0xff]
        %v1256 = vld [vmem:[#allocation2 + $0x178] sm:$0xff]
        %v1257 = vlaneseq
        %v1258 = vshrl.u32 %v1257, 7
        %v1259 = vsub.s32 0, %v1258
        %v1260 = vrot.slane %v1207, %v1259
        %v1261 = vmul.f32 %v1209, %v1260
        %v1262 = vmul.f32 %v1210, %v1260
        %v1263 = vmul.f32 %v1212, %v1260
        %v1264 = vmul.f32 %v1213, %v1260
        %v1265 = vmul.f32 %v1215, %v1260
        %v1266 = vmul.f32 %v1216, %v1260
        %v1267 = vmul.f32 %v1218, %v1260
        %v1268 = vmul.f32 %v1219, %v1260
        %v1269 = vmul.f32 %v1221, %v1260
        %v1270 = vmul.f32 %v1222, %v1260
        %v1271 = vmul.f32 %v1224, %v1260
        %v1272 = vmul.f32 %v1225, %v1260
        %v1273 = vmul.f32 %v1227, %v1260
        %v1274 = vmul.f32 %v1228, %v1260
        %v1275 = vmul.f32 %v1230, %v1260
        %v1276 = vmul.f32 %v1231, %v1260
        %v1277 = vmul.f32 %v1233, %v1260
        %v1278 = vmul.f32 %v1234, %v1260
        %v1279 = vmul.f32 %v1236, %v1260
        %v1280 = vmul.f32 %v1237, %v1260
        %v1281 = vmul.f32 %v1239, %v1260
        %v1282 = vmul.f32 %v1240, %v1260
        %v1283 = vmul.f32 %v1242, %v1260
        %v1284 = vmul.f32 %v1243, %v1260
        %v1285 = vmul.f32 %v1245, %v1260
        %v1286 = vmul.f32 %v1246, %v1260
        %v1287 = vmul.f32 %v1248, %v1260
        %v1288 = vmul.f32 %v1249, %v1260
        %v1289 = vmul.f32 %v1251, %v1260
        %v1290 = vmul.f32 %v1252, %v1260
        %v1291 = vmul.f32 %v1254, %v1260
        %v1292 = vmul.f32 %v1255, %v1260
        %v1293 = vrot.slane %v1209, 1
        %v1294 = vrot.slane %v1210, 1
        %v1295 = vrot.slane %v1211, 1
        %v1296 = vrot.slane %v1212, 1
        %v1297 = vrot.slane %v1213, 1
        %v1298 = vrot.slane %v1214, 1
        %v1299 = vrot.slane %v1215, 1
        %v1300 = vrot.slane %v1216, 1
        %v1301 = vrot.slane %v1217, 1
        %v1302 = vrot.slane %v1218, 1
        %v1303 = vrot.slane %v1219, 1
        %v1304 = vrot.slane %v1220, 1
        %v1305 = vrot.slane %v1221, 1
        %v1306 = vrot.slane %v1222, 1
        %v1307 = vrot.slane %v1223, 1
        %v1308 = vrot.slane %v1224, 1
        %v1309 = vrot.slane %v1225, 1
        %v1310 = vrot.slane %v1226, 1
        %v1311 = vrot.slane %v1227, 1
        %v1312 = vrot.slane %v1228, 1
        %v1313 = vrot.slane %v1229, 1
        %v1314 = vrot.slane %v1230, 1
        %v1315 = vrot.slane %v1231, 1
        %v1316 = vrot.slane %v1232, 1
        %v1317 = vrot.slane %v1233, 1
        %v1318 = vrot.slane %v1234, 1
        %v1319 = vrot.slane %v1235, 1
        %v1320 = vrot.slane %v1236, 1
        %v1321 = vrot.slane %v1237, 1
        %v1322 = vrot.slane %v1238, 1
        %v1323 = vrot.slane %v1239, 1
        %v1324 = vrot.slane %v1240, 1
        %v1325 = vrot.slane %v1241, 1
        %v1326 = vrot.slane %v1242, 1
        %v1327 = vrot.slane %v1243, 1
        %v1328 = vrot.slane %v1244, 1
        %v1329 = vrot.slane %v1245, 1
        %v1330 = vrot.slane %v1246, 1
        %v1331 = vrot.slane %v1247, 1
        %v1332 = vrot.slane %v1248, 1
        %v1333 = vrot.slane %v1249, 1
        %v1334 = vrot.slane %v1250, 1
        %v1335 = vrot.slane %v1251, 1
        %v1336 = vrot.slane %v1252, 1
        %v1337 = vrot.slane %v1253, 1
        %v1338 = vrot.slane %v1254, 1
        %v1339 = vrot.slane %v1255, 1
        %v1340 = vrot.slane %v1256, 1
        %v1341 = vlaneseq
        %v1342 = vshrl.u32 %v1341, 7
        %vm1343 = vcmp.lt.s32.totalorder %v1342, 7
        %v1344 = vsel %vm1343, %v1339, %v1340
        %v1345 = vsel %vm1343, %v1338, %v1339
        %v1346 = vsel %vm1343, %v1336, %v1337
        %v1347 = vsel %vm1343, %v1335, %v1336
        %v1348 = vsel %vm1343, %v1333, %v1334
        %v1349 = vsel %vm1343, %v1332, %v1333
        %v1350 = vsel %vm1343, %v1330, %v1331
        %v1351 = vsel %vm1343, %v1329, %v1330
        %v1352 = vsel %vm1343, %v1327, %v1328
        %v1353 = vsel %vm1343, %v1326, %v1327
        %v1354 = vsel %vm1343, %v1324, %v1325
        %v1355 = vsel %vm1343, %v1323, %v1324
        %v1356 = vsel %vm1343, %v1321, %v1322
        %v1357 = vsel %vm1343, %v1320, %v1321
        %v1358 = vsel %vm1343, %v1318, %v1319
        %v1359 = vsel %vm1343, %v1317, %v1318
        %v1360 = vsel %vm1343, %v1315, %v1316
        %v1361 = vsel %vm1343, %v1314, %v1315
        %v1362 = vsel %vm1343, %v1312, %v1313
        %v1363 = vsel %vm1343, %v1311, %v1312
        %v1364 = vsel %vm1343, %v1309, %v1310
        %v1365 = vsel %vm1343, %v1308, %v1309
        %v1366 = vsel %vm1343, %v1306, %v1307
        %v1367 = vsel %vm1343, %v1305, %v1306
        %v1368 = vsel %vm1343, %v1303, %v1304
        %v1369 = vsel %vm1343, %v1302, %v1303
        %v1370 = vsel %vm1343, %v1300, %v1301
        %v1371 = vsel %vm1343, %v1299, %v1300
        %v1372 = vsel %vm1343, %v1297, %v1298
        %v1373 = vsel %vm1343, %v1296, %v1297
        %v1374 = vsel %vm1343, %v1294, %v1295
        %v1375 = vsel %vm1343, %v1293, %v1294
        %v1376 = vlaneseq
        %v1377 = vshrl.u32 %v1376, 7
        %v1378 = vsub.s32 1, %v1377
        %v1379 = vrot.slane %v1207, %v1378
        %v1380 = vmul.f32 %v1375, %v1379
        %v1381 = vmul.f32 %v1374, %v1379
        %v1382 = vmul.f32 %v1373, %v1379
        %v1383 = vmul.f32 %v1372, %v1379
        %v1384 = vmul.f32 %v1371, %v1379
        %v1385 = vmul.f32 %v1370, %v1379
        %v1386 = vmul.f32 %v1369, %v1379
        %v1387 = vmul.f32 %v1368, %v1379
        %v1388 = vmul.f32 %v1367, %v1379
        %v1389 = vmul.f32 %v1366, %v1379
        %v1390 = vmul.f32 %v1365, %v1379
        %v1391 = vmul.f32 %v1364, %v1379
        %v1392 = vmul.f32 %v1363, %v1379
        %v1393 = vmul.f32 %v1362, %v1379
        %v1394 = vmul.f32 %v1361, %v1379
        %v1395 = vmul.f32 %v1360, %v1379
        %v1396 = vmul.f32 %v1359, %v1379
        %v1397 = vmul.f32 %v1358, %v1379
        %v1398 = vmul.f32 %v1357, %v1379
        %v1399 = vmul.f32 %v1356, %v1379
        %v1400 = vmul.f32 %v1355, %v1379
        %v1401 = vmul.f32 %v1354, %v1379
        %v1402 = vmul.f32 %v1353, %v1379
        %v1403 = vmul.f32 %v1352, %v1379
        %v1404 = vmul.f32 %v1351, %v1379
        %v1405 = vmul.f32 %v1350, %v1379
        %v1406 = vmul.f32 %v1349, %v1379
        %v1407 = vmul.f32 %v1348, %v1379
        %v1408 = vmul.f32 %v1347, %v1379
        %v1409 = vmul.f32 %v1346, %v1379
        %v1410 = vmul.f32 %v1345, %v1379
        %v1411 = vmul.f32 %v1344, %v1379
        %v1412 = vadd.f32 %v1261, %v1380
        %v1413 = vadd.f32 %v1262, %v1381
        %v1414 = vadd.f32 %v1263, %v1382
        %v1415 = vadd.f32 %v1264, %v1383
        %v1416 = vadd.f32 %v1265, %v1384
        %v1417 = vadd.f32 %v1266, %v1385
        %v1418 = vadd.f32 %v1267, %v1386
        %v1419 = vadd.f32 %v1268, %v1387
        %v1420 = vadd.f32 %v1269, %v1388
        %v1421 = vadd.f32 %v1270, %v1389
        %v1422 = vadd.f32 %v1271, %v1390
        %v1423 = vadd.f32 %v1272, %v1391
        %v1424 = vadd.f32 %v1273, %v1392
        %v1425 = vadd.f32 %v1274, %v1393
        %v1426 = vadd.f32 %v1275, %v1394
        %v1427 = vadd.f32 %v1276, %v1395
        %v1428 = vadd.f32 %v1277, %v1396
        %v1429 = vadd.f32 %v1278, %v1397
        %v1430 = vadd.f32 %v1279, %v1398
        %v1431 = vadd.f32 %v1280, %v1399
        %v1432 = vadd.f32 %v1281, %v1400
        %v1433 = vadd.f32 %v1282, %v1401
        %v1434 = vadd.f32 %v1283, %v1402
        %v1435 = vadd.f32 %v1284, %v1403
        %v1436 = vadd.f32 %v1285, %v1404
        %v1437 = vadd.f32 %v1286, %v1405
        %v1438 = vadd.f32 %v1287, %v1406
        %v1439 = vadd.f32 %v1288, %v1407
        %v1440 = vadd.f32 %v1289, %v1408
        %v1441 = vadd.f32 %v1290, %v1409
        %v1442 = vadd.f32 %v1291, %v1410
        %v1443 = vadd.f32 %v1292, %v1411
        %v1444 = vrot.slane %v1209, 2
        %v1445 = vrot.slane %v1210, 2
        %v1446 = vrot.slane %v1211, 2
        %v1447 = vrot.slane %v1212, 2
        %v1448 = vrot.slane %v1213, 2
        %v1449 = vrot.slane %v1214, 2
        %v1450 = vrot.slane %v1215, 2
        %v1451 = vrot.slane %v1216, 2
        %v1452 = vrot.slane %v1217, 2
        %v1453 = vrot.slane %v1218, 2
        %v1454 = vrot.slane %v1219, 2
        %v1455 = vrot.slane %v1220, 2
        %v1456 = vrot.slane %v1221, 2
        %v1457 = vrot.slane %v1222, 2
        %v1458 = vrot.slane %v1223, 2
        %v1459 = vrot.slane %v1224, 2
        %v1460 = vrot.slane %v1225, 2
        %v1461 = vrot.slane %v1226, 2
        %v1462 = vrot.slane %v1227, 2
        %v1463 = vrot.slane %v1228, 2
        %v1464 = vrot.slane %v1229, 2
        %v1465 = vrot.slane %v1230, 2
        %v1466 = vrot.slane %v1231, 2
        %v1467 = vrot.slane %v1232, 2
        %v1468 = vrot.slane %v1233, 2
        %v1469 = vrot.slane %v1234, 2
        %v1470 = vrot.slane %v1235, 2
        %v1471 = vrot.slane %v1236, 2
        %v1472 = vrot.slane %v1237, 2
        %v1473 = vrot.slane %v1238, 2
        %v1474 = vrot.slane %v1239, 2
        %v1475 = vrot.slane %v1240, 2
        %v1476 = vrot.slane %v1241, 2
        %v1477 = vrot.slane %v1242, 2
        %v1478 = vrot.slane %v1243, 2
        %v1479 = vrot.slane %v1244, 2
        %v1480 = vrot.slane %v1245, 2
        %v1481 = vrot.slane %v1246, 2
        %v1482 = vrot.slane %v1247, 2
        %v1483 = vrot.slane %v1248, 2
        %v1484 = vrot.slane %v1249, 2
        %v1485 = vrot.slane %v1250, 2
        %v1486 = vrot.slane %v1251, 2
        %v1487 = vrot.slane %v1252, 2
        %v1488 = vrot.slane %v1253, 2
        %v1489 = vrot.slane %v1254, 2
        %v1490 = vrot.slane %v1255, 2
        %v1491 = vrot.slane %v1256, 2
        %vm1492 = vcmp.lt.s32.totalorder %v1342, 6
        %v1493 = vsel %vm1492, %v1490, %v1491
        %v1494 = vsel %vm1492, %v1489, %v1490
        %v1495 = vsel %vm1492, %v1487, %v1488
        %v1496 = vsel %vm1492, %v1486, %v1487
        %v1497 = vsel %vm1492, %v1484, %v1485
        %v1498 = vsel %vm1492, %v1483, %v1484
        %v1499 = vsel %vm1492, %v1481, %v1482
        %v1500 = vsel %vm1492, %v1480, %v1481
        %v1501 = vsel %vm1492, %v1478, %v1479
        %v1502 = vsel %vm1492, %v1477, %v1478
        %v1503 = vsel %vm1492, %v1475, %v1476
        %v1504 = vsel %vm1492, %v1474, %v1475
        %v1505 = vsel %vm1492, %v1472, %v1473
        %v1506 = vsel %vm1492, %v1471, %v1472
        %v1507 = vsel %vm1492, %v1469, %v1470
        %v1508 = vsel %vm1492, %v1468, %v1469
        %v1509 = vsel %vm1492, %v1466, %v1467
        %v1510 = vsel %vm1492, %v1465, %v1466
        %v1511 = vsel %vm1492, %v1463, %v1464
        %v1512 = vsel %vm1492, %v1462, %v1463
        %v1513 = vsel %vm1492, %v1460, %v1461
        %v1514 = vsel %vm1492, %v1459, %v1460
        %v1515 = vsel %vm1492, %v1457, %v1458
        %v1516 = vsel %vm1492, %v1456, %v1457
        %v1517 = vsel %vm1492, %v1454, %v1455
        %v1518 = vsel %vm1492, %v1453, %v1454
        %v1519 = vsel %vm1492, %v1451, %v1452
        %v1520 = vsel %vm1492, %v1450, %v1451
        %v1521 = vsel %vm1492, %v1448, %v1449
        %v1522 = vsel %vm1492, %v1447, %v1448
        %v1523 = vsel %vm1492, %v1445, %v1446
        %v1524 = vsel %vm1492, %v1444, %v1445
        %v1525 = vlaneseq
        %v1526 = vshrl.u32 %v1525, 7
        %v1527 = vsub.s32 2, %v1526
        %v1528 = vrot.slane %v1207, %v1527
        %v1529 = vmul.f32 %v1524, %v1528
        %v1530 = vmul.f32 %v1523, %v1528
        %v1531 = vmul.f32 %v1522, %v1528
        %v1532 = vmul.f32 %v1521, %v1528
        %v1533 = vmul.f32 %v1520, %v1528
        %v1534 = vmul.f32 %v1519, %v1528
        %v1535 = vmul.f32 %v1518, %v1528
        %v1536 = vmul.f32 %v1517, %v1528
        %v1537 = vmul.f32 %v1516, %v1528
        %v1538 = vmul.f32 %v1515, %v1528
        %v1539 = vmul.f32 %v1514, %v1528
        %v1540 = vmul.f32 %v1513, %v1528
        %v1541 = vmul.f32 %v1512, %v1528
        %v1542 = vmul.f32 %v1511, %v1528
        %v1543 = vmul.f32 %v1510, %v1528
        %v1544 = vmul.f32 %v1509, %v1528
        %v1545 = vmul.f32 %v1508, %v1528
        %v1546 = vmul.f32 %v1507, %v1528
        %v1547 = vmul.f32 %v1506, %v1528
        %v1548 = vmul.f32 %v1505, %v1528
        %v1549 = vmul.f32 %v1504, %v1528
        %v1550 = vmul.f32 %v1503, %v1528
        %v1551 = vmul.f32 %v1502, %v1528
        %v1552 = vmul.f32 %v1501, %v1528
        %v1553 = vmul.f32 %v1500, %v1528
        %v1554 = vmul.f32 %v1499, %v1528
        %v1555 = vmul.f32 %v1498, %v1528
        %v1556 = vmul.f32 %v1497, %v1528
        %v1557 = vmul.f32 %v1496, %v1528
        %v1558 = vmul.f32 %v1495, %v1528
        %v1559 = vmul.f32 %v1494, %v1528
        %v1560 = vmul.f32 %v1493, %v1528
        %v1561 = vadd.f32 %v1412, %v1529
        %v1562 = vadd.f32 %v1413, %v1530
        %v1563 = vadd.f32 %v1414, %v1531
        %v1564 = vadd.f32 %v1415, %v1532
        %v1565 = vadd.f32 %v1416, %v1533
        %v1566 = vadd.f32 %v1417, %v1534
        %v1567 = vadd.f32 %v1418, %v1535
        %v1568 = vadd.f32 %v1419, %v1536
        %v1569 = vadd.f32 %v1420, %v1537
        %v1570 = vadd.f32 %v1421, %v1538
        %v1571 = vadd.f32 %v1422, %v1539
        %v1572 = vadd.f32 %v1423, %v1540
        %v1573 = vadd.f32 %v1424, %v1541
        %v1574 = vadd.f32 %v1425, %v1542
        %v1575 = vadd.f32 %v1426, %v1543
        %v1576 = vadd.f32 %v1427, %v1544
        %v1577 = vadd.f32 %v1428, %v1545
        %v1578 = vadd.f32 %v1429, %v1546
        %v1579 = vadd.f32 %v1430, %v1547
        %v1580 = vadd.f32 %v1431, %v1548
        %v1581 = vadd.f32 %v1432, %v1549
        %v1582 = vadd.f32 %v1433, %v1550
        %v1583 = vadd.f32 %v1434, %v1551
        %v1584 = vadd.f32 %v1435, %v1552
        %v1585 = vadd.f32 %v1436, %v1553
        %v1586 = vadd.f32 %v1437, %v1554
        %v1587 = vadd.f32 %v1438, %v1555
        %v1588 = vadd.f32 %v1439, %v1556
        %v1589 = vadd.f32 %v1440, %v1557
        %v1590 = vadd.f32 %v1441, %v1558
        %v1591 = vadd.f32 %v1442, %v1559
        %v1592 = vadd.f32 %v1443, %v1560
        %s1593 = scalar_lea.vmem [#allocation2], 24
        %v1594 = vld [vmem:[%s1593] sm:$0xff]
        %v1595 = vld [vmem:[%s1593 + $0x8] sm:$0xff]
        %v1596 = vld [vmem:[%s1593 + $0x10] sm:$0xff]
        %v1597 = vld [vmem:[%s1593 + $0x18] sm:$0xff]
        %v1598 = vld [vmem:[%s1593 + $0x20] sm:$0xff]
        %v1599 = vld [vmem:[%s1593 + $0x28] sm:$0xff]
        %v1600 = vld [vmem:[%s1593 + $0x30] sm:$0xff]
        %v1601 = vld [vmem:[%s1593 + $0x38] sm:$0xff]
        %v1602 = vld [vmem:[%s1593 + $0x40] sm:$0xff]
        %v1603 = vld [vmem:[%s1593 + $0x48] sm:$0xff]
        %v1604 = vld [vmem:[%s1593 + $0x50] sm:$0xff]
        %v1605 = vld [vmem:[%s1593 + $0x58] sm:$0xff]
        %v1606 = vld [vmem:[%s1593 + $0x60] sm:$0xff]
        %v1607 = vld [vmem:[%s1593 + $0x68] sm:$0xff]
        %v1608 = vld [vmem:[%s1593 + $0x70] sm:$0xff]
        %v1609 = vld [vmem:[%s1593 + $0x78] sm:$0xff]
        %v1610 = vld [vmem:[%s1593 + $0x80] sm:$0xff]
        %v1611 = vld [vmem:[%s1593 + $0x88] sm:$0xff]
        %v1612 = vld [vmem:[%s1593 + $0x90] sm:$0xff]
        %v1613 = vld [vmem:[%s1593 + $0x98] sm:$0xff]
        %v1614 = vld [vmem:[%s1593 + $0xa0] sm:$0xff]
        %v1615 = vld [vmem:[%s1593 + $0xa8] sm:$0xff]
        %v1616 = vld [vmem:[%s1593 + $0xb0] sm:$0xff]
        %v1617 = vld [vmem:[%s1593 + $0xb8] sm:$0xff]
        %v1618 = vld [vmem:[%s1593 + $0xc0] sm:$0xff]
        %v1619 = vld [vmem:[%s1593 + $0xc8] sm:$0xff]
        %v1620 = vld [vmem:[%s1593 + $0xd0] sm:$0xff]
        %v1621 = vld [vmem:[%s1593 + $0xd8] sm:$0xff]
        %v1622 = vld [vmem:[%s1593 + $0xe0] sm:$0xff]
        %v1623 = vld [vmem:[%s1593 + $0xe8] sm:$0xff]
        %v1624 = vld [vmem:[%s1593 + $0xf0] sm:$0xff]
        %v1625 = vld [vmem:[%s1593 + $0xf8] sm:$0xff]
        %v1626 = vld [vmem:[%s1593 + $0x100] sm:$0xff]
        %v1627 = vld [vmem:[%s1593 + $0x108] sm:$0xff]
        %v1628 = vld [vmem:[%s1593 + $0x110] sm:$0xff]
        %v1629 = vld [vmem:[%s1593 + $0x118] sm:$0xff]
        %v1630 = vld [vmem:[%s1593 + $0x120] sm:$0xff]
        %v1631 = vld [vmem:[%s1593 + $0x128] sm:$0xff]
        %v1632 = vld [vmem:[%s1593 + $0x130] sm:$0xff]
        %v1633 = vld [vmem:[%s1593 + $0x138] sm:$0xff]
        %v1634 = vld [vmem:[%s1593 + $0x140] sm:$0xff]
        %v1635 = vld [vmem:[%s1593 + $0x148] sm:$0xff]
        %v1636 = vld [vmem:[%s1593 + $0x150] sm:$0xff]
        %v1637 = vld [vmem:[%s1593 + $0x158] sm:$0xff]
        %v1638 = vld [vmem:[%s1593 + $0x160] sm:$0xff]
        %v1639 = vld [vmem:[%s1593 + $0x168] sm:$0xff]
        %v1640 = vld [vmem:[%s1593 + $0x170] sm:$0xff]
        %v1641 = vld [vmem:[%s1593 + $0x178] sm:$0xff]
        %v1642 = vlaneseq
        %v1643 = vshrl.u32 %v1642, 7
        %v1644 = vsub.s32 3, %v1643
        %v1645 = vrot.slane %v1207, %v1644
        %v1646 = vmul.f32 %v1594, %v1645
        %v1647 = vmul.f32 %v1595, %v1645
        %v1648 = vmul.f32 %v1597, %v1645
        %v1649 = vmul.f32 %v1598, %v1645
        %v1650 = vmul.f32 %v1600, %v1645
        %v1651 = vmul.f32 %v1601, %v1645
        %v1652 = vmul.f32 %v1603, %v1645
        %v1653 = vmul.f32 %v1604, %v1645
        %v1654 = vmul.f32 %v1606, %v1645
        %v1655 = vmul.f32 %v1607, %v1645
        %v1656 = vmul.f32 %v1609, %v1645
        %v1657 = vmul.f32 %v1610, %v1645
        %v1658 = vmul.f32 %v1612, %v1645
        %v1659 = vmul.f32 %v1613, %v1645
        %v1660 = vmul.f32 %v1615, %v1645
        %v1661 = vmul.f32 %v1616, %v1645
        %v1662 = vmul.f32 %v1618, %v1645
        %v1663 = vmul.f32 %v1619, %v1645
        %v1664 = vmul.f32 %v1621, %v1645
        %v1665 = vmul.f32 %v1622, %v1645
        %v1666 = vmul.f32 %v1624, %v1645
        %v1667 = vmul.f32 %v1625, %v1645
        %v1668 = vmul.f32 %v1627, %v1645
        %v1669 = vmul.f32 %v1628, %v1645
        %v1670 = vmul.f32 %v1630, %v1645
        %v1671 = vmul.f32 %v1631, %v1645
        %v1672 = vmul.f32 %v1633, %v1645
        %v1673 = vmul.f32 %v1634, %v1645
        %v1674 = vmul.f32 %v1636, %v1645
        %v1675 = vmul.f32 %v1637, %v1645
        %v1676 = vmul.f32 %v1639, %v1645
        %v1677 = vmul.f32 %v1640, %v1645
        %v1678 = vadd.f32 %v1561, %v1646
        %v1679 = vadd.f32 %v1562, %v1647
        %v1680 = vadd.f32 %v1563, %v1648
        %v1681 = vadd.f32 %v1564, %v1649
        %v1682 = vadd.f32 %v1565, %v1650
        %v1683 = vadd.f32 %v1566, %v1651
        %v1684 = vadd.f32 %v1567, %v1652
        %v1685 = vadd.f32 %v1568, %v1653
        %v1686 = vadd.f32 %v1569, %v1654
        %v1687 = vadd.f32 %v1570, %v1655
        %v1688 = vadd.f32 %v1571, %v1656
        %v1689 = vadd.f32 %v1572, %v1657
        %v1690 = vadd.f32 %v1573, %v1658
        %v1691 = vadd.f32 %v1574, %v1659
        %v1692 = vadd.f32 %v1575, %v1660
        %v1693 = vadd.f32 %v1576, %v1661
        %v1694 = vadd.f32 %v1577, %v1662
        %v1695 = vadd.f32 %v1578, %v1663
        %v1696 = vadd.f32 %v1579, %v1664
        %v1697 = vadd.f32 %v1580, %v1665
        %v1698 = vadd.f32 %v1581, %v1666
        %v1699 = vadd.f32 %v1582, %v1667
        %v1700 = vadd.f32 %v1583, %v1668
        %v1701 = vadd.f32 %v1584, %v1669
        %v1702 = vadd.f32 %v1585, %v1670
        %v1703 = vadd.f32 %v1586, %v1671
        %v1704 = vadd.f32 %v1587, %v1672
        %v1705 = vadd.f32 %v1588, %v1673
        %v1706 = vadd.f32 %v1589, %v1674
        %v1707 = vadd.f32 %v1590, %v1675
        %v1708 = vadd.f32 %v1591, %v1676
        %v1709 = vadd.f32 %v1592, %v1677
        %v1710 = vrot.slane %v1594, 1
        %v1711 = vrot.slane %v1595, 1
        %v1712 = vrot.slane %v1596, 1
        %v1713 = vrot.slane %v1597, 1
        %v1714 = vrot.slane %v1598, 1
        %v1715 = vrot.slane %v1599, 1
        %v1716 = vrot.slane %v1600, 1
        %v1717 = vrot.slane %v1601, 1
        %v1718 = vrot.slane %v1602, 1
        %v1719 = vrot.slane %v1603, 1
        %v1720 = vrot.slane %v1604, 1
        %v1721 = vrot.slane %v1605, 1
        %v1722 = vrot.slane %v1606, 1
        %v1723 = vrot.slane %v1607, 1
        %v1724 = vrot.slane %v1608, 1
        %v1725 = vrot.slane %v1609, 1
        %v1726 = vrot.slane %v1610, 1
        %v1727 = vrot.slane %v1611, 1
        %v1728 = vrot.slane %v1612, 1
        %v1729 = vrot.slane %v1613, 1
        %v1730 = vrot.slane %v1614, 1
        %v1731 = vrot.slane %v1615, 1
        %v1732 = vrot.slane %v1616, 1
        %v1733 = vrot.slane %v1617, 1
        %v1734 = vrot.slane %v1618, 1
        %v1735 = vrot.slane %v1619, 1
        %v1736 = vrot.slane %v1620, 1
        %v1737 = vrot.slane %v1621, 1
        %v1738 = vrot.slane %v1622, 1
        %v1739 = vrot.slane %v1623, 1
        %v1740 = vrot.slane %v1624, 1
        %v1741 = vrot.slane %v1625, 1
        %v1742 = vrot.slane %v1626, 1
        %v1743 = vrot.slane %v1627, 1
        %v1744 = vrot.slane %v1628, 1
        %v1745 = vrot.slane %v1629, 1
        %v1746 = vrot.slane %v1630, 1
        %v1747 = vrot.slane %v1631, 1
        %v1748 = vrot.slane %v1632, 1
        %v1749 = vrot.slane %v1633, 1
        %v1750 = vrot.slane %v1634, 1
        %v1751 = vrot.slane %v1635, 1
        %v1752 = vrot.slane %v1636, 1
        %v1753 = vrot.slane %v1637, 1
        %v1754 = vrot.slane %v1638, 1
        %v1755 = vrot.slane %v1639, 1
        %v1756 = vrot.slane %v1640, 1
        %v1757 = vrot.slane %v1641, 1
        %v1758 = vsel %vm1343, %v1756, %v1757
        %v1759 = vsel %vm1343, %v1755, %v1756
        %v1760 = vsel %vm1343, %v1753, %v1754
        %v1761 = vsel %vm1343, %v1752, %v1753
        %v1762 = vsel %vm1343, %v1750, %v1751
        %v1763 = vsel %vm1343, %v1749, %v1750
        %v1764 = vsel %vm1343, %v1747, %v1748
        %v1765 = vsel %vm1343, %v1746, %v1747
        %v1766 = vsel %vm1343, %v1744, %v1745
        %v1767 = vsel %vm1343, %v1743, %v1744
        %v1768 = vsel %vm1343, %v1741, %v1742
        %v1769 = vsel %vm1343, %v1740, %v1741
        %v1770 = vsel %vm1343, %v1738, %v1739
        %v1771 = vsel %vm1343, %v1737, %v1738
        %v1772 = vsel %vm1343, %v1735, %v1736
        %v1773 = vsel %vm1343, %v1734, %v1735
        %v1774 = vsel %vm1343, %v1732, %v1733
        %v1775 = vsel %vm1343, %v1731, %v1732
        %v1776 = vsel %vm1343, %v1729, %v1730
        %v1777 = vsel %vm1343, %v1728, %v1729
        %v1778 = vsel %vm1343, %v1726, %v1727
        %v1779 = vsel %vm1343, %v1725, %v1726
        %v1780 = vsel %vm1343, %v1723, %v1724
        %v1781 = vsel %vm1343, %v1722, %v1723
        %v1782 = vsel %vm1343, %v1720, %v1721
        %v1783 = vsel %vm1343, %v1719, %v1720
        %v1784 = vsel %vm1343, %v1717, %v1718
        %v1785 = vsel %vm1343, %v1716, %v1717
        %v1786 = vsel %vm1343, %v1714, %v1715
        %v1787 = vsel %vm1343, %v1713, %v1714
        %v1788 = vsel %vm1343, %v1711, %v1712
        %v1789 = vsel %vm1343, %v1710, %v1711
        %v1790 = vlaneseq
        %v1791 = vshrl.u32 %v1790, 7
        %v1792 = vsub.s32 4, %v1791
        %v1793 = vrot.slane %v1207, %v1792
        %v1794 = vmul.f32 %v1789, %v1793
        %v1795 = vmul.f32 %v1788, %v1793
        %v1796 = vmul.f32 %v1787, %v1793
        %v1797 = vmul.f32 %v1786, %v1793
        %v1798 = vmul.f32 %v1785, %v1793
        %v1799 = vmul.f32 %v1784, %v1793
        %v1800 = vmul.f32 %v1783, %v1793
        %v1801 = vmul.f32 %v1782, %v1793
        %v1802 = vmul.f32 %v1781, %v1793
        %v1803 = vmul.f32 %v1780, %v1793
        %v1804 = vmul.f32 %v1779, %v1793
        %v1805 = vmul.f32 %v1778, %v1793
        %v1806 = vmul.f32 %v1777, %v1793
        %v1807 = vmul.f32 %v1776, %v1793
        %v1808 = vmul.f32 %v1775, %v1793
        %v1809 = vmul.f32 %v1774, %v1793
        %v1810 = vmul.f32 %v1773, %v1793
        %v1811 = vmul.f32 %v1772, %v1793
        %v1812 = vmul.f32 %v1771, %v1793
        %v1813 = vmul.f32 %v1770, %v1793
        %v1814 = vmul.f32 %v1769, %v1793
        %v1815 = vmul.f32 %v1768, %v1793
        %v1816 = vmul.f32 %v1767, %v1793
        %v1817 = vmul.f32 %v1766, %v1793
        %v1818 = vmul.f32 %v1765, %v1793
        %v1819 = vmul.f32 %v1764, %v1793
        %v1820 = vmul.f32 %v1763, %v1793
        %v1821 = vmul.f32 %v1762, %v1793
        %v1822 = vmul.f32 %v1761, %v1793
        %v1823 = vmul.f32 %v1760, %v1793
        %v1824 = vmul.f32 %v1759, %v1793
        %v1825 = vmul.f32 %v1758, %v1793
        %v1826 = vadd.f32 %v1678, %v1794
        %v1827 = vadd.f32 %v1679, %v1795
        %v1828 = vadd.f32 %v1680, %v1796
        %v1829 = vadd.f32 %v1681, %v1797
        %v1830 = vadd.f32 %v1682, %v1798
        %v1831 = vadd.f32 %v1683, %v1799
        %v1832 = vadd.f32 %v1684, %v1800
        %v1833 = vadd.f32 %v1685, %v1801
        %v1834 = vadd.f32 %v1686, %v1802
        %v1835 = vadd.f32 %v1687, %v1803
        %v1836 = vadd.f32 %v1688, %v1804
        %v1837 = vadd.f32 %v1689, %v1805
        %v1838 = vadd.f32 %v1690, %v1806
        %v1839 = vadd.f32 %v1691, %v1807
        %v1840 = vadd.f32 %v1692, %v1808
        %v1841 = vadd.f32 %v1693, %v1809
        %v1842 = vadd.f32 %v1694, %v1810
        %v1843 = vadd.f32 %v1695, %v1811
        %v1844 = vadd.f32 %v1696, %v1812
        %v1845 = vadd.f32 %v1697, %v1813
        %v1846 = vadd.f32 %v1698, %v1814
        %v1847 = vadd.f32 %v1699, %v1815
        %v1848 = vadd.f32 %v1700, %v1816
        %v1849 = vadd.f32 %v1701, %v1817
        %v1850 = vadd.f32 %v1702, %v1818
        %v1851 = vadd.f32 %v1703, %v1819
        %v1852 = vadd.f32 %v1704, %v1820
        %v1853 = vadd.f32 %v1705, %v1821
        %v1854 = vadd.f32 %v1706, %v1822
        %v1855 = vadd.f32 %v1707, %v1823
        %v1856 = vadd.f32 %v1708, %v1824
        %v1857 = vadd.f32 %v1709, %v1825
        %v1858 = vrot.slane %v1594, 2
        %v1859 = vrot.slane %v1595, 2
        %v1860 = vrot.slane %v1596, 2
        %v1861 = vrot.slane %v1597, 2
        %v1862 = vrot.slane %v1598, 2
        %v1863 = vrot.slane %v1599, 2
        %v1864 = vrot.slane %v1600, 2
        %v1865 = vrot.slane %v1601, 2
        %v1866 = vrot.slane %v1602, 2
        %v1867 = vrot.slane %v1603, 2
        %v1868 = vrot.slane %v1604, 2
        %v1869 = vrot.slane %v1605, 2
        %v1870 = vrot.slane %v1606, 2
        %v1871 = vrot.slane %v1607, 2
        %v1872 = vrot.slane %v1608, 2
        %v1873 = vrot.slane %v1609, 2
        %v1874 = vrot.slane %v1610, 2
        %v1875 = vrot.slane %v1611, 2
        %v1876 = vrot.slane %v1612, 2
        %v1877 = vrot.slane %v1613, 2
        %v1878 = vrot.slane %v1614, 2
        %v1879 = vrot.slane %v1615, 2
        %v1880 = vrot.slane %v1616, 2
        %v1881 = vrot.slane %v1617, 2
        %v1882 = vrot.slane %v1618, 2
        %v1883 = vrot.slane %v1619, 2
        %v1884 = vrot.slane %v1620, 2
        %v1885 = vrot.slane %v1621, 2
        %v1886 = vrot.slane %v1622, 2
        %v1887 = vrot.slane %v1623, 2
        %v1888 = vrot.slane %v1624, 2
        %v1889 = vrot.slane %v1625, 2
        %v1890 = vrot.slane %v1626, 2
        %v1891 = vrot.slane %v1627, 2
        %v1892 = vrot.slane %v1628, 2
        %v1893 = vrot.slane %v1629, 2
        %v1894 = vrot.slane %v1630, 2
        %v1895 = vrot.slane %v1631, 2
        %v1896 = vrot.slane %v1632, 2
        %v1897 = vrot.slane %v1633, 2
        %v1898 = vrot.slane %v1634, 2
        %v1899 = vrot.slane %v1635, 2
        %v1900 = vrot.slane %v1636, 2
        %v1901 = vrot.slane %v1637, 2
        %v1902 = vrot.slane %v1638, 2
        %v1903 = vrot.slane %v1639, 2
        %v1904 = vrot.slane %v1640, 2
        %v1905 = vrot.slane %v1641, 2
        %v1906 = vsel %vm1492, %v1904, %v1905
        %v1907 = vsel %vm1492, %v1903, %v1904
        %v1908 = vsel %vm1492, %v1901, %v1902
        %v1909 = vsel %vm1492, %v1900, %v1901
        %v1910 = vsel %vm1492, %v1898, %v1899
        %v1911 = vsel %vm1492, %v1897, %v1898
        %v1912 = vsel %vm1492, %v1895, %v1896
        %v1913 = vsel %vm1492, %v1894, %v1895
        %v1914 = vsel %vm1492, %v1892, %v1893
        %v1915 = vsel %vm1492, %v1891, %v1892
        %v1916 = vsel %vm1492, %v1889, %v1890
        %v1917 = vsel %vm1492, %v1888, %v1889
        %v1918 = vsel %vm1492, %v1886, %v1887
        %v1919 = vsel %vm1492, %v1885, %v1886
        %v1920 = vsel %vm1492, %v1883, %v1884
        %v1921 = vsel %vm1492, %v1882, %v1883
        %v1922 = vsel %vm1492, %v1880, %v1881
        %v1923 = vsel %vm1492, %v1879, %v1880
        %v1924 = vsel %vm1492, %v1877, %v1878
        %v1925 = vsel %vm1492, %v1876, %v1877
        %v1926 = vsel %vm1492, %v1874, %v1875
        %v1927 = vsel %vm1492, %v1873, %v1874
        %v1928 = vsel %vm1492, %v1871, %v1872
        %v1929 = vsel %vm1492, %v1870, %v1871
        %v1930 = vsel %vm1492, %v1868, %v1869
        %v1931 = vsel %vm1492, %v1867, %v1868
        %v1932 = vsel %vm1492, %v1865, %v1866
        %v1933 = vsel %vm1492, %v1864, %v1865
        %v1934 = vsel %vm1492, %v1862, %v1863
        %v1935 = vsel %vm1492, %v1861, %v1862
        %v1936 = vsel %vm1492, %v1859, %v1860
        %v1937 = vsel %vm1492, %v1858, %v1859
        %v1938 = vlaneseq
        %v1939 = vshrl.u32 %v1938, 7
        %v1940 = vsub.s32 5, %v1939
        %v1941 = vrot.slane %v1207, %v1940
        %v1942 = vmul.f32 %v1937, %v1941
        %v1943 = vmul.f32 %v1936, %v1941
        %v1944 = vmul.f32 %v1935, %v1941
        %v1945 = vmul.f32 %v1934, %v1941
        %v1946 = vmul.f32 %v1933, %v1941
        %v1947 = vmul.f32 %v1932, %v1941
        %v1948 = vmul.f32 %v1931, %v1941
        %v1949 = vmul.f32 %v1930, %v1941
        %v1950 = vmul.f32 %v1929, %v1941
        %v1951 = vmul.f32 %v1928, %v1941
        %v1952 = vmul.f32 %v1927, %v1941
        %v1953 = vmul.f32 %v1926, %v1941
        %v1954 = vmul.f32 %v1925, %v1941
        %v1955 = vmul.f32 %v1924, %v1941
        %v1956 = vmul.f32 %v1923, %v1941
        %v1957 = vmul.f32 %v1922, %v1941
        %v1958 = vmul.f32 %v1921, %v1941
        %v1959 = vmul.f32 %v1920, %v1941
        %v1960 = vmul.f32 %v1919, %v1941
        %v1961 = vmul.f32 %v1918, %v1941
        %v1962 = vmul.f32 %v1917, %v1941
        %v1963 = vmul.f32 %v1916, %v1941
        %v1964 = vmul.f32 %v1915, %v1941
        %v1965 = vmul.f32 %v1914, %v1941
        %v1966 = vmul.f32 %v1913, %v1941
        %v1967 = vmul.f32 %v1912, %v1941
        %v1968 = vmul.f32 %v1911, %v1941
        %v1969 = vmul.f32 %v1910, %v1941
        %v1970 = vmul.f32 %v1909, %v1941
        %v1971 = vmul.f32 %v1908, %v1941
        %v1972 = vmul.f32 %v1907, %v1941
        %v1973 = vmul.f32 %v1906, %v1941
        %v1974 = vadd.f32 %v1826, %v1942
        %v1975 = vadd.f32 %v1827, %v1943
        %v1976 = vadd.f32 %v1828, %v1944
        %v1977 = vadd.f32 %v1829, %v1945
        %v1978 = vadd.f32 %v1830, %v1946
        %v1979 = vadd.f32 %v1831, %v1947
        %v1980 = vadd.f32 %v1832, %v1948
        %v1981 = vadd.f32 %v1833, %v1949
        %v1982 = vadd.f32 %v1834, %v1950
        %v1983 = vadd.f32 %v1835, %v1951
        %v1984 = vadd.f32 %v1836, %v1952
        %v1985 = vadd.f32 %v1837, %v1953
        %v1986 = vadd.f32 %v1838, %v1954
        %v1987 = vadd.f32 %v1839, %v1955
        %v1988 = vadd.f32 %v1840, %v1956
        %v1989 = vadd.f32 %v1841, %v1957
        %v1990 = vadd.f32 %v1842, %v1958
        %v1991 = vadd.f32 %v1843, %v1959
        %v1992 = vadd.f32 %v1844, %v1960
        %v1993 = vadd.f32 %v1845, %v1961
        %v1994 = vadd.f32 %v1846, %v1962
        %v1995 = vadd.f32 %v1847, %v1963
        %v1996 = vadd.f32 %v1848, %v1964
        %v1997 = vadd.f32 %v1849, %v1965
        %v1998 = vadd.f32 %v1850, %v1966
        %v1999 = vadd.f32 %v1851, %v1967
        %v2000 = vadd.f32 %v1852, %v1968
        %v2001 = vadd.f32 %v1853, %v1969
        %v2002 = vadd.f32 %v1854, %v1970
        %v2003 = vadd.f32 %v1855, %v1971
        %v2004 = vadd.f32 %v1856, %v1972
        %v2005 = vadd.f32 %v1857, %v1973
        %s2006 = scalar_lea.vmem [#allocation2], 48
        %v2007 = vld [vmem:[%s2006] sm:$0xff]
        %v2008 = vld [vmem:[%s2006 + $0x8] sm:$0xff]
        %v2009 = vld [vmem:[%s2006 + $0x10] sm:$0xff]
        %v2010 = vld [vmem:[%s2006 + $0x18] sm:$0xff]
        %v2011 = vld [vmem:[%s2006 + $0x20] sm:$0xff]
        %v2012 = vld [vmem:[%s2006 + $0x28] sm:$0xff]
        %v2013 = vld [vmem:[%s2006 + $0x30] sm:$0xff]
        %v2014 = vld [vmem:[%s2006 + $0x38] sm:$0xff]
        %v2015 = vld [vmem:[%s2006 + $0x40] sm:$0xff]
        %v2016 = vld [vmem:[%s2006 + $0x48] sm:$0xff]
        %v2017 = vld [vmem:[%s2006 + $0x50] sm:$0xff]
        %v2018 = vld [vmem:[%s2006 + $0x58] sm:$0xff]
        %v2019 = vld [vmem:[%s2006 + $0x60] sm:$0xff]
        %v2020 = vld [vmem:[%s2006 + $0x68] sm:$0xff]
        %v2021 = vld [vmem:[%s2006 + $0x70] sm:$0xff]
        %v2022 = vld [vmem:[%s2006 + $0x78] sm:$0xff]
        %v2023 = vld [vmem:[%s2006 + $0x80] sm:$0xff]
        %v2024 = vld [vmem:[%s2006 + $0x88] sm:$0xff]
        %v2025 = vld [vmem:[%s2006 + $0x90] sm:$0xff]
        %v2026 = vld [vmem:[%s2006 + $0x98] sm:$0xff]
        %v2027 = vld [vmem:[%s2006 + $0xa0] sm:$0xff]
        %v2028 = vld [vmem:[%s2006 + $0xa8] sm:$0xff]
        %v2029 = vld [vmem:[%s2006 + $0xb0] sm:$0xff]
        %v2030 = vld [vmem:[%s2006 + $0xb8] sm:$0xff]
        %v2031 = vld [vmem:[%s2006 + $0xc0] sm:$0xff]
        %v2032 = vld [vmem:[%s2006 + $0xc8] sm:$0xff]
        %v2033 = vld [vmem:[%s2006 + $0xd0] sm:$0xff]
        %v2034 = vld [vmem:[%s2006 + $0xd8] sm:$0xff]
        %v2035 = vld [vmem:[%s2006 + $0xe0] sm:$0xff]
        %v2036 = vld [vmem:[%s2006 + $0xe8] sm:$0xff]
        %v2037 = vld [vmem:[%s2006 + $0xf0] sm:$0xff]
        %v2038 = vld [vmem:[%s2006 + $0xf8] sm:$0xff]
        %v2039 = vld [vmem:[%s2006 + $0x100] sm:$0xff]
        %v2040 = vld [vmem:[%s2006 + $0x108] sm:$0xff]
        %v2041 = vld [vmem:[%s2006 + $0x110] sm:$0xff]
        %v2042 = vld [vmem:[%s2006 + $0x118] sm:$0xff]
        %v2043 = vld [vmem:[%s2006 + $0x120] sm:$0xff]
        %v2044 = vld [vmem:[%s2006 + $0x128] sm:$0xff]
        %v2045 = vld [vmem:[%s2006 + $0x130] sm:$0xff]
        %v2046 = vld [vmem:[%s2006 + $0x138] sm:$0xff]
        %v2047 = vld [vmem:[%s2006 + $0x140] sm:$0xff]
        %v2048 = vld [vmem:[%s2006 + $0x148] sm:$0xff]
        %v2049 = vld [vmem:[%s2006 + $0x150] sm:$0xff]
        %v2050 = vld [vmem:[%s2006 + $0x158] sm:$0xff]
        %v2051 = vld [vmem:[%s2006 + $0x160] sm:$0xff]
        %v2052 = vld [vmem:[%s2006 + $0x168] sm:$0xff]
        %v2053 = vld [vmem:[%s2006 + $0x170] sm:$0xff]
        %v2054 = vld [vmem:[%s2006 + $0x178] sm:$0xff]
        %v2055 = vlaneseq
        %v2056 = vshrl.u32 %v2055, 7
        %v2057 = vsub.s32 6, %v2056
        %v2058 = vrot.slane %v1207, %v2057
        %v2059 = vmul.f32 %v2007, %v2058
        %v2060 = vmul.f32 %v2008, %v2058
        %v2061 = vmul.f32 %v2010, %v2058
        %v2062 = vmul.f32 %v2011, %v2058
        %v2063 = vmul.f32 %v2013, %v2058
        %v2064 = vmul.f32 %v2014, %v2058
        %v2065 = vmul.f32 %v2016, %v2058
        %v2066 = vmul.f32 %v2017, %v2058
        %v2067 = vmul.f32 %v2019, %v2058
        %v2068 = vmul.f32 %v2020, %v2058
        %v2069 = vmul.f32 %v2022, %v2058
        %v2070 = vmul.f32 %v2023, %v2058
        %v2071 = vmul.f32 %v2025, %v2058
        %v2072 = vmul.f32 %v2026, %v2058
        %v2073 = vmul.f32 %v2028, %v2058
        %v2074 = vmul.f32 %v2029, %v2058
        %v2075 = vmul.f32 %v2031, %v2058
        %v2076 = vmul.f32 %v2032, %v2058
        %v2077 = vmul.f32 %v2034, %v2058
        %v2078 = vmul.f32 %v2035, %v2058
        %v2079 = vmul.f32 %v2037, %v2058
        %v2080 = vmul.f32 %v2038, %v2058
        %v2081 = vmul.f32 %v2040, %v2058
        %v2082 = vmul.f32 %v2041, %v2058
        %v2083 = vmul.f32 %v2043, %v2058
        %v2084 = vmul.f32 %v2044, %v2058
        %v2085 = vmul.f32 %v2046, %v2058
        %v2086 = vmul.f32 %v2047, %v2058
        %v2087 = vmul.f32 %v2049, %v2058
        %v2088 = vmul.f32 %v2050, %v2058
        %v2089 = vmul.f32 %v2052, %v2058
        %v2090 = vmul.f32 %v2053, %v2058
        %v2091 = vadd.f32 %v1974, %v2059
        %v2092 = vadd.f32 %v1975, %v2060
        %v2093 = vadd.f32 %v1976, %v2061
        %v2094 = vadd.f32 %v1977, %v2062
        %v2095 = vadd.f32 %v1978, %v2063
        %v2096 = vadd.f32 %v1979, %v2064
        %v2097 = vadd.f32 %v1980, %v2065
        %v2098 = vadd.f32 %v1981, %v2066
        %v2099 = vadd.f32 %v1982, %v2067
        %v2100 = vadd.f32 %v1983, %v2068
        %v2101 = vadd.f32 %v1984, %v2069
        %v2102 = vadd.f32 %v1985, %v2070
        %v2103 = vadd.f32 %v1986, %v2071
        %v2104 = vadd.f32 %v1987, %v2072
        %v2105 = vadd.f32 %v1988, %v2073
        %v2106 = vadd.f32 %v1989, %v2074
        %v2107 = vadd.f32 %v1990, %v2075
        %v2108 = vadd.f32 %v1991, %v2076
        %v2109 = vadd.f32 %v1992, %v2077
        %v2110 = vadd.f32 %v1993, %v2078
        %v2111 = vadd.f32 %v1994, %v2079
        %v2112 = vadd.f32 %v1995, %v2080
        %v2113 = vadd.f32 %v1996, %v2081
        %v2114 = vadd.f32 %v1997, %v2082
        %v2115 = vadd.f32 %v1998, %v2083
        %v2116 = vadd.f32 %v1999, %v2084
        %v2117 = vadd.f32 %v2000, %v2085
        %v2118 = vadd.f32 %v2001, %v2086
        %v2119 = vadd.f32 %v2002, %v2087
        %v2120 = vadd.f32 %v2003, %v2088
        %v2121 = vadd.f32 %v2004, %v2089
        %v2122 = vadd.f32 %v2005, %v2090
        %v2123 = vrot.slane %v2007, 1
        %v2124 = vrot.slane %v2008, 1
        %v2125 = vrot.slane %v2009, 1
        %v2126 = vrot.slane %v2010, 1
        %v2127 = vrot.slane %v2011, 1
        %v2128 = vrot.slane %v2012, 1
        %v2129 = vrot.slane %v2013, 1
        %v2130 = vrot.slane %v2014, 1
        %v2131 = vrot.slane %v2015, 1
        %v2132 = vrot.slane %v2016, 1
        %v2133 = vrot.slane %v2017, 1
        %v2134 = vrot.slane %v2018, 1
        %v2135 = vrot.slane %v2019, 1
        %v2136 = vrot.slane %v2020, 1
        %v2137 = vrot.slane %v2021, 1
        %v2138 = vrot.slane %v2022, 1
        %v2139 = vrot.slane %v2023, 1
        %v2140 = vrot.slane %v2024, 1
        %v2141 = vrot.slane %v2025, 1
        %v2142 = vrot.slane %v2026, 1
        %v2143 = vrot.slane %v2027, 1
        %v2144 = vrot.slane %v2028, 1
        %v2145 = vrot.slane %v2029, 1
        %v2146 = vrot.slane %v2030, 1
        %v2147 = vrot.slane %v2031, 1
        %v2148 = vrot.slane %v2032, 1
        %v2149 = vrot.slane %v2033, 1
        %v2150 = vrot.slane %v2034, 1
        %v2151 = vrot.slane %v2035, 1
        %v2152 = vrot.slane %v2036, 1
        %v2153 = vrot.slane %v2037, 1
        %v2154 = vrot.slane %v2038, 1
        %v2155 = vrot.slane %v2039, 1
        %v2156 = vrot.slane %v2040, 1
        %v2157 = vrot.slane %v2041, 1
        %v2158 = vrot.slane %v2042, 1
        %v2159 = vrot.slane %v2043, 1
        %v2160 = vrot.slane %v2044, 1
        %v2161 = vrot.slane %v2045, 1
        %v2162 = vrot.slane %v2046, 1
        %v2163 = vrot.slane %v2047, 1
        %v2164 = vrot.slane %v2048, 1
        %v2165 = vrot.slane %v2049, 1
        %v2166 = vrot.slane %v2050, 1
        %v2167 = vrot.slane %v2051, 1
        %v2168 = vrot.slane %v2052, 1
        %v2169 = vrot.slane %v2053, 1
        %v2170 = vrot.slane %v2054, 1
        %v2171 = vsel %vm1343, %v2169, %v2170
        %v2172 = vsel %vm1343, %v2168, %v2169
        %v2173 = vsel %vm1343, %v2166, %v2167
        %v2174 = vsel %vm1343, %v2165, %v2166
        %v2175 = vsel %vm1343, %v2163, %v2164
        %v2176 = vsel %vm1343, %v2162, %v2163
        %v2177 = vsel %vm1343, %v2160, %v2161
        %v2178 = vsel %vm1343, %v2159, %v2160
        %v2179 = vsel %vm1343, %v2157, %v2158
        %v2180 = vsel %vm1343, %v2156, %v2157
        %v2181 = vsel %vm1343, %v2154, %v2155
        %v2182 = vsel %vm1343, %v2153, %v2154
        %v2183 = vsel %vm1343, %v2151, %v2152
        %v2184 = vsel %vm1343, %v2150, %v2151
        %v2185 = vsel %vm1343, %v2148, %v2149
        %v2186 = vsel %vm1343, %v2147, %v2148
        %v2187 = vsel %vm1343, %v2145, %v2146
        %v2188 = vsel %vm1343, %v2144, %v2145
        %v2189 = vsel %vm1343, %v2142, %v2143
        %v2190 = vsel %vm1343, %v2141, %v2142
        %v2191 = vsel %vm1343, %v2139, %v2140
        %v2192 = vsel %vm1343, %v2138, %v2139
        %v2193 = vsel %vm1343, %v2136, %v2137
        %v2194 = vsel %vm1343, %v2135, %v2136
        %v2195 = vsel %vm1343, %v2133, %v2134
        %v2196 = vsel %vm1343, %v2132, %v2133
        %v2197 = vsel %vm1343, %v2130, %v2131
        %v2198 = vsel %vm1343, %v2129, %v2130
        %v2199 = vsel %vm1343, %v2127, %v2128
        %v2200 = vsel %vm1343, %v2126, %v2127
        %v2201 = vsel %vm1343, %v2124, %v2125
        %v2202 = vsel %vm1343, %v2123, %v2124
        %v2203 = vlaneseq
        %v2204 = vshrl.u32 %v2203, 7
        %v2205 = vsub.s32 7, %v2204
        %v2206 = vrot.slane %v1207, %v2205
        %v2207 = vmul.f32 %v2202, %v2206
        %v2208 = vmul.f32 %v2201, %v2206
        %v2209 = vmul.f32 %v2200, %v2206
        %v2210 = vmul.f32 %v2199, %v2206
        %v2211 = vmul.f32 %v2198, %v2206
        %v2212 = vmul.f32 %v2197, %v2206
        %v2213 = vmul.f32 %v2196, %v2206
        %v2214 = vmul.f32 %v2195, %v2206
        %v2215 = vmul.f32 %v2194, %v2206
        %v2216 = vmul.f32 %v2193, %v2206
        %v2217 = vmul.f32 %v2192, %v2206
        %v2218 = vmul.f32 %v2191, %v2206
        %v2219 = vmul.f32 %v2190, %v2206
        %v2220 = vmul.f32 %v2189, %v2206
        %v2221 = vmul.f32 %v2188, %v2206
        %v2222 = vmul.f32 %v2187, %v2206
        %v2223 = vmul.f32 %v2186, %v2206
        %v2224 = vmul.f32 %v2185, %v2206
        %v2225 = vmul.f32 %v2184, %v2206
        %v2226 = vmul.f32 %v2183, %v2206
        %v2227 = vmul.f32 %v2182, %v2206
        %v2228 = vmul.f32 %v2181, %v2206
        %v2229 = vmul.f32 %v2180, %v2206
        %v2230 = vmul.f32 %v2179, %v2206
        %v2231 = vmul.f32 %v2178, %v2206
        %v2232 = vmul.f32 %v2177, %v2206
        %v2233 = vmul.f32 %v2176, %v2206
        %v2234 = vmul.f32 %v2175, %v2206
        %v2235 = vmul.f32 %v2174, %v2206
        %v2236 = vmul.f32 %v2173, %v2206
        %v2237 = vmul.f32 %v2172, %v2206
        %v2238 = vmul.f32 %v2171, %v2206
        %v2239 = vadd.f32 %v2091, %v2207
        %v2240 = vadd.f32 %v2092, %v2208
        %v2241 = vadd.f32 %v2093, %v2209
        %v2242 = vadd.f32 %v2094, %v2210
        %v2243 = vadd.f32 %v2095, %v2211
        %v2244 = vadd.f32 %v2096, %v2212
        %v2245 = vadd.f32 %v2097, %v2213
        %v2246 = vadd.f32 %v2098, %v2214
        %v2247 = vadd.f32 %v2099, %v2215
        %v2248 = vadd.f32 %v2100, %v2216
        %v2249 = vadd.f32 %v2101, %v2217
        %v2250 = vadd.f32 %v2102, %v2218
        %v2251 = vadd.f32 %v2103, %v2219
        %v2252 = vadd.f32 %v2104, %v2220
        %v2253 = vadd.f32 %v2105, %v2221
        %v2254 = vadd.f32 %v2106, %v2222
        %v2255 = vadd.f32 %v2107, %v2223
        %v2256 = vadd.f32 %v2108, %v2224
        %v2257 = vadd.f32 %v2109, %v2225
        %v2258 = vadd.f32 %v2110, %v2226
        %v2259 = vadd.f32 %v2111, %v2227
        %v2260 = vadd.f32 %v2112, %v2228
        %v2261 = vadd.f32 %v2113, %v2229
        %v2262 = vadd.f32 %v2114, %v2230
        %v2263 = vadd.f32 %v2115, %v2231
        %v2264 = vadd.f32 %v2116, %v2232
        %v2265 = vadd.f32 %v2117, %v2233
        %v2266 = vadd.f32 %v2118, %v2234
        %v2267 = vadd.f32 %v2119, %v2235
        %v2268 = vadd.f32 %v2120, %v2236
        %v2269 = vadd.f32 %v2121, %v2237
        %v2270 = vadd.f32 %v2122, %v2238
        %v2271 = vrot.slane %v2007, 2
        %v2272 = vrot.slane %v2008, 2
        %v2273 = vrot.slane %v2009, 2
        %v2274 = vrot.slane %v2010, 2
        %v2275 = vrot.slane %v2011, 2
        %v2276 = vrot.slane %v2012, 2
        %v2277 = vrot.slane %v2013, 2
        %v2278 = vrot.slane %v2014, 2
        %v2279 = vrot.slane %v2015, 2
        %v2280 = vrot.slane %v2016, 2
        %v2281 = vrot.slane %v2017, 2
        %v2282 = vrot.slane %v2018, 2
        %v2283 = vrot.slane %v2019, 2
        %v2284 = vrot.slane %v2020, 2
        %v2285 = vrot.slane %v2021, 2
        %v2286 = vrot.slane %v2022, 2
        %v2287 = vrot.slane %v2023, 2
        %v2288 = vrot.slane %v2024, 2
        %v2289 = vrot.slane %v2025, 2
        %v2290 = vrot.slane %v2026, 2
        %v2291 = vrot.slane %v2027, 2
        %v2292 = vrot.slane %v2028, 2
        %v2293 = vrot.slane %v2029, 2
        %v2294 = vrot.slane %v2030, 2
        %v2295 = vrot.slane %v2031, 2
        %v2296 = vrot.slane %v2032, 2
        %v2297 = vrot.slane %v2033, 2
        %v2298 = vrot.slane %v2034, 2
        %v2299 = vrot.slane %v2035, 2
        %v2300 = vrot.slane %v2036, 2
        %v2301 = vrot.slane %v2037, 2
        %v2302 = vrot.slane %v2038, 2
        %v2303 = vrot.slane %v2039, 2
        %v2304 = vrot.slane %v2040, 2
        %v2305 = vrot.slane %v2041, 2
        %v2306 = vrot.slane %v2042, 2
        %v2307 = vrot.slane %v2043, 2
        %v2308 = vrot.slane %v2044, 2
        %v2309 = vrot.slane %v2045, 2
        %v2310 = vrot.slane %v2046, 2
        %v2311 = vrot.slane %v2047, 2
        %v2312 = vrot.slane %v2048, 2
        %v2313 = vrot.slane %v2049, 2
        %v2314 = vrot.slane %v2050, 2
        %v2315 = vrot.slane %v2051, 2
        %v2316 = vrot.slane %v2052, 2
        %v2317 = vrot.slane %v2053, 2
        %v2318 = vrot.slane %v2054, 2
        %v2319 = vsel %vm1492, %v2317, %v2318
        %v2320 = vsel %vm1492, %v2316, %v2317
        %v2321 = vsel %vm1492, %v2314, %v2315
        %v2322 = vsel %vm1492, %v2313, %v2314
        %v2323 = vsel %vm1492, %v2311, %v2312
        %v2324 = vsel %vm1492, %v2310, %v2311
        %v2325 = vsel %vm1492, %v2308, %v2309
        %v2326 = vsel %vm1492, %v2307, %v2308
        %v2327 = vsel %vm1492, %v2305, %v2306
        %v2328 = vsel %vm1492, %v2304, %v2305
        %v2329 = vsel %vm1492, %v2302, %v2303
        %v2330 = vsel %vm1492, %v2301, %v2302
        %v2331 = vsel %vm1492, %v2299, %v2300
        %v2332 = vsel %vm1492, %v2298, %v2299
        %v2333 = vsel %vm1492, %v2296, %v2297
        %v2334 = vsel %vm1492, %v2295, %v2296
        %v2335 = vsel %vm1492, %v2293, %v2294
        %v2336 = vsel %vm1492, %v2292, %v2293
        %v2337 = vsel %vm1492, %v2290, %v2291
        %v2338 = vsel %vm1492, %v2289, %v2290
        %v2339 = vsel %vm1492, %v2287, %v2288
        %v2340 = vsel %vm1492, %v2286, %v2287
        %v2341 = vsel %vm1492, %v2284, %v2285
        %v2342 = vsel %vm1492, %v2283, %v2284
        %v2343 = vsel %vm1492, %v2281, %v2282
        %v2344 = vsel %vm1492, %v2280, %v2281
        %v2345 = vsel %vm1492, %v2278, %v2279
        %v2346 = vsel %vm1492, %v2277, %v2278
        %v2347 = vsel %vm1492, %v2275, %v2276
        %v2348 = vsel %vm1492, %v2274, %v2275
        %v2349 = vsel %vm1492, %v2272, %v2273
        %v2350 = vsel %vm1492, %v2271, %v2272
        %v2351 = vlaneseq
        %v2352 = vshrl.u32 %v2351, 7
        %v2353 = vsub.s32 0, %v2352
        %v2354 = vrot.slane %v1208, %v2353
        %v2355 = vmul.f32 %v2350, %v2354
        %v2356 = vmul.f32 %v2349, %v2354
        %v2357 = vmul.f32 %v2348, %v2354
        %v2358 = vmul.f32 %v2347, %v2354
        %v2359 = vmul.f32 %v2346, %v2354
        %v2360 = vmul.f32 %v2345, %v2354
        %v2361 = vmul.f32 %v2344, %v2354
        %v2362 = vmul.f32 %v2343, %v2354
        %v2363 = vmul.f32 %v2342, %v2354
        %v2364 = vmul.f32 %v2341, %v2354
        %v2365 = vmul.f32 %v2340, %v2354
        %v2366 = vmul.f32 %v2339, %v2354
        %v2367 = vmul.f32 %v2338, %v2354
        %v2368 = vmul.f32 %v2337, %v2354
        %v2369 = vmul.f32 %v2336, %v2354
        %v2370 = vmul.f32 %v2335, %v2354
        %v2371 = vmul.f32 %v2334, %v2354
        %v2372 = vmul.f32 %v2333, %v2354
        %v2373 = vmul.f32 %v2332, %v2354
        %v2374 = vmul.f32 %v2331, %v2354
        %v2375 = vmul.f32 %v2330, %v2354
        %v2376 = vmul.f32 %v2329, %v2354
        %v2377 = vmul.f32 %v2328, %v2354
        %v2378 = vmul.f32 %v2327, %v2354
        %v2379 = vmul.f32 %v2326, %v2354
        %v2380 = vmul.f32 %v2325, %v2354
        %v2381 = vmul.f32 %v2324, %v2354
        %v2382 = vmul.f32 %v2323, %v2354
        %v2383 = vmul.f32 %v2322, %v2354
        %v2384 = vmul.f32 %v2321, %v2354
        %v2385 = vmul.f32 %v2320, %v2354
        %v2386 = vmul.f32 %v2319, %v2354
        %v2387 = vadd.f32 %v2239, %v2355
        %v2388 = vadd.f32 %v2240, %v2356
        %v2389 = vadd.f32 %v2241, %v2357
        %v2390 = vadd.f32 %v2242, %v2358
        %v2391 = vadd.f32 %v2243, %v2359
        %v2392 = vadd.f32 %v2244, %v2360
        %v2393 = vadd.f32 %v2245, %v2361
        %v2394 = vadd.f32 %v2246, %v2362
        %v2395 = vadd.f32 %v2247, %v2363
        %v2396 = vadd.f32 %v2248, %v2364
        %v2397 = vadd.f32 %v2249, %v2365
        %v2398 = vadd.f32 %v2250, %v2366
        %v2399 = vadd.f32 %v2251, %v2367
        %v2400 = vadd.f32 %v2252, %v2368
        %v2401 = vadd.f32 %v2253, %v2369
        %v2402 = vadd.f32 %v2254, %v2370
        %v2403 = vadd.f32 %v2255, %v2371
        %v2404 = vadd.f32 %v2256, %v2372
        %v2405 = vadd.f32 %v2257, %v2373
        %v2406 = vadd.f32 %v2258, %v2374
        %v2407 = vadd.f32 %v2259, %v2375
        %v2408 = vadd.f32 %v2260, %v2376
        %v2409 = vadd.f32 %v2261, %v2377
        %v2410 = vadd.f32 %v2262, %v2378
        %v2411 = vadd.f32 %v2263, %v2379
        %v2412 = vadd.f32 %v2264, %v2380
        %v2413 = vadd.f32 %v2265, %v2381
        %v2414 = vadd.f32 %v2266, %v2382
        %v2415 = vadd.f32 %v2267, %v2383
        %v2416 = vadd.f32 %v2268, %v2384
        %v2417 = vadd.f32 %v2269, %v2385
        %v2418 = vadd.f32 %v2270, %v2386
        %v2419 = vld [vmem:[%s5] sm:$0x1]
        %v2421 = vlaneseq
        %v2422 = vshrl.u32 %v2421, 7
        %v2423 = vsub.s32 0, %v2422
        %v2424 = vrot.slane %v2419, %v2423
        %v2426 = vmul.f32 %v2387, %v2424
        %v2427 = vmul.f32 %v2388, %v2424
        %v2428 = vmul.f32 %v2389, %v2424
        %v2429 = vmul.f32 %v2390, %v2424
        %v2430 = vmul.f32 %v2391, %v2424
        %v2431 = vmul.f32 %v2392, %v2424
        %v2432 = vmul.f32 %v2393, %v2424
        %v2433 = vmul.f32 %v2394, %v2424
        %v2434 = vmul.f32 %v2395, %v2424
        %v2435 = vmul.f32 %v2396, %v2424
        %v2436 = vmul.f32 %v2397, %v2424
        %v2437 = vmul.f32 %v2398, %v2424
        %v2438 = vmul.f32 %v2399, %v2424
        %v2439 = vmul.f32 %v2400, %v2424
        %v2440 = vmul.f32 %v2401, %v2424
        %v2441 = vmul.f32 %v2402, %v2424
        %v2442 = vmul.f32 %v2403, %v2424
        %v2443 = vmul.f32 %v2404, %v2424
        %v2444 = vmul.f32 %v2405, %v2424
        %v2445 = vmul.f32 %v2406, %v2424
        %v2446 = vmul.f32 %v2407, %v2424
        %v2447 = vmul.f32 %v2408, %v2424
        %v2448 = vmul.f32 %v2409, %v2424
        %v2449 = vmul.f32 %v2410, %v2424
        %v2450 = vmul.f32 %v2411, %v2424
        %v2451 = vmul.f32 %v2412, %v2424
        %v2452 = vmul.f32 %v2413, %v2424
        %v2453 = vmul.f32 %v2414, %v2424
        %v2454 = vmul.f32 %v2415, %v2424
        %v2455 = vmul.f32 %v2416, %v2424
        %v2456 = vmul.f32 %v2417, %v2424
        %v2457 = vmul.f32 %v2418, %v2424
        %v2458 = vld [vmem:[%s6] sm:$0x1]
        %v2460 = vlaneseq
        %v2461 = vshrl.u32 %v2460, 7
        %v2462 = vsub.s32 0, %v2461
        %v2463 = vrot.slane %v2458, %v2462
        %v2465 = vadd.f32 %v2426, %v2463
        %v2466 = vadd.f32 %v2427, %v2463
        %v2467 = vadd.f32 %v2428, %v2463
        %v2468 = vadd.f32 %v2429, %v2463
        %v2469 = vadd.f32 %v2430, %v2463
        %v2470 = vadd.f32 %v2431, %v2463
        %v2471 = vadd.f32 %v2432, %v2463
        %v2472 = vadd.f32 %v2433, %v2463
        %v2473 = vadd.f32 %v2434, %v2463
        %v2474 = vadd.f32 %v2435, %v2463
        %v2475 = vadd.f32 %v2436, %v2463
        %v2476 = vadd.f32 %v2437, %v2463
        %v2477 = vadd.f32 %v2438, %v2463
        %v2478 = vadd.f32 %v2439, %v2463
        %v2479 = vadd.f32 %v2440, %v2463
        %v2480 = vadd.f32 %v2441, %v2463
        %v2481 = vadd.f32 %v2442, %v2463
        %v2482 = vadd.f32 %v2443, %v2463
        %v2483 = vadd.f32 %v2444, %v2463
        %v2484 = vadd.f32 %v2445, %v2463
        %v2485 = vadd.f32 %v2446, %v2463
        %v2486 = vadd.f32 %v2447, %v2463
        %v2487 = vadd.f32 %v2448, %v2463
        %v2488 = vadd.f32 %v2449, %v2463
        %v2489 = vadd.f32 %v2450, %v2463
        %v2490 = vadd.f32 %v2451, %v2463
        %v2491 = vadd.f32 %v2452, %v2463
        %v2492 = vadd.f32 %v2453, %v2463
        %v2493 = vadd.f32 %v2454, %v2463
        %v2494 = vadd.f32 %v2455, %v2463
        %v2495 = vadd.f32 %v2456, %v2463
        %v2496 = vadd.f32 %v2457, %v2463
        %v2497 = vmax.f32 %v2465, 0.0
        %v2498 = vmax.f32 %v2466, 0.0
        %v2499 = vmax.f32 %v2467, 0.0
        %v2500 = vmax.f32 %v2468, 0.0
        %v2501 = vmax.f32 %v2469, 0.0
        %v2502 = vmax.f32 %v2470, 0.0
        %v2503 = vmax.f32 %v2471, 0.0
        %v2504 = vmax.f32 %v2472, 0.0
        %v2505 = vmax.f32 %v2473, 0.0
        %v2506 = vmax.f32 %v2474, 0.0
        %v2507 = vmax.f32 %v2475, 0.0
        %v2508 = vmax.f32 %v2476, 0.0
        %v2509 = vmax.f32 %v2477, 0.0
        %v2510 = vmax.f32 %v2478, 0.0
        %v2511 = vmax.f32 %v2479, 0.0
        %v2512 = vmax.f32 %v2480, 0.0
        %v2513 = vmax.f32 %v2481, 0.0
        %v2514 = vmax.f32 %v2482, 0.0
        %v2515 = vmax.f32 %v2483, 0.0
        %v2516 = vmax.f32 %v2484, 0.0
        %v2517 = vmax.f32 %v2485, 0.0
        %v2518 = vmax.f32 %v2486, 0.0
        %v2519 = vmax.f32 %v2487, 0.0
        %v2520 = vmax.f32 %v2488, 0.0
        %v2521 = vmax.f32 %v2489, 0.0
        %v2522 = vmax.f32 %v2490, 0.0
        %v2523 = vmax.f32 %v2491, 0.0
        %v2524 = vmax.f32 %v2492, 0.0
        %v2525 = vmax.f32 %v2493, 0.0
        %v2526 = vmax.f32 %v2494, 0.0
        %v2527 = vmax.f32 %v2495, 0.0
        %v2528 = vmax.f32 %v2496, 0.0
        %v2529 = vpack.c.bf16 %v2498, %v2497
        %v2530 = vpack.c.bf16 %v2500, %v2499
        %v2531 = vpack.c.bf16 %v2502, %v2501
        %v2532 = vpack.c.bf16 %v2504, %v2503
        %v2533 = vpack.c.bf16 %v2506, %v2505
        %v2534 = vpack.c.bf16 %v2508, %v2507
        %v2535 = vpack.c.bf16 %v2510, %v2509
        %v2536 = vpack.c.bf16 %v2512, %v2511
        %v2537 = vpack.c.bf16 %v2514, %v2513
        %v2538 = vpack.c.bf16 %v2516, %v2515
        %v2539 = vpack.c.bf16 %v2518, %v2517
        %v2540 = vpack.c.bf16 %v2520, %v2519
        %v2541 = vpack.c.bf16 %v2522, %v2521
        %v2542 = vpack.c.bf16 %v2524, %v2523
        %v2543 = vpack.c.bf16 %v2526, %v2525
        %v2544 = vpack.c.bf16 %v2528, %v2527
        %v2545 = vld [vmem:[%s7] sm:$0xf]
        %2546 = vmatprep.subr.bf16.mxu0 0
        %2547 = vmatpush1.bf16.xpose.msra.mxu0 %v2529
        %2548 = vmatprep.subr.bf16.mxu0 0
        %2549 = vmatpush1.bf16.xpose.msra.mxu0 %v2530
        %2550 = vmatprep.subr.bf16.mxu0 0
        %2551 = vmatpush1.bf16.xpose.msra.mxu0 %v2531
        %2552 = vmatprep.subr.bf16.mxu0 0
        %2553 = vmatpush1.bf16.xpose.msra.mxu0 %v2532
        %2554 = vmatprep.subr.bf16.mxu0 0
        %2555 = vmatpush1.bf16.xpose.msra.mxu0 %v2533
        %2556 = vmatprep.subr.bf16.mxu0 0
        %2557 = vmatpush1.bf16.xpose.msra.mxu0 %v2534
        %2558 = vmatprep.subr.bf16.mxu0 0
        %2559 = vmatpush1.bf16.xpose.msra.mxu0 %v2535
        %2560 = vmatprep.subr.bf16.mxu0 0
        %2561 = vmatpush1.bf16.xpose.msra.mxu0 %v2536
        %2562 = vmatprep.subr.bf16.mxu0 0
        %2563 = vmatpush1.bf16.xpose.msra.mxu0 %v2537
        %2564 = vmatprep.subr.bf16.mxu0 0
        %2565 = vmatpush1.bf16.xpose.msra.mxu0 %v2538
        %2566 = vmatprep.subr.bf16.mxu0 0
        %2567 = vmatpush1.bf16.xpose.msra.mxu0 %v2539
        %2568 = vmatprep.subr.bf16.mxu0 0
        %2569 = vmatpush1.bf16.xpose.msra.mxu0 %v2540
        %2570 = vmatprep.subr.bf16.mxu0 0
        %2571 = vmatpush1.bf16.xpose.msra.mxu0 %v2541
        %2572 = vmatprep.subr.bf16.mxu0 0
        %2573 = vmatpush1.bf16.xpose.msra.mxu0 %v2542
        %2574 = vmatprep.subr.bf16.mxu0 0
        %2575 = vmatpush1.bf16.xpose.msra.mxu0 %v2543
        %2576 = vmatprep.subr.bf16.mxu0 0
        %2577 = vmatpush1.bf16.xpose.msra.mxu0 %v2544
        %2578 = vmatprep.mubr.bf16.mxu0 0
        %2579 = vmatmul.mubr.bf16.gmra.mrb[0].mxu0 %v2545
        %v2580 = vpop.f32.mrb[0].mxu0
        %v2581 = vadd.f32 0.0, %v2580
        %v2582 = vpop.f32.mrb[0].mxu0
        %v2583 = vadd.f32 0.0, %v2582
        %v2584 = vpop.f32.mrb[0].mxu0
        %v2585 = vpop.f32.mrb[0].mxu0
        %2586 = vdwg.mxu0
        %v2587 = vld [vmem:[%s8] sm:$0xff]
        %2589 = vset.pattern.permute.xlu0 0
        %2590 = vperm.xlu0 %2589, %v2587
        %v2591 = vpop.permute.xlu0 %2590
        %v2593 = vmul.f32 %v2581, %v2591
        %v2594 = vmul.f32 %v2583, %v2591
        %v2595 = vld [vmem:[%s9] sm:$0xff]
        %2597 = vset.pattern.permute.xlu0 0
        %2598 = vperm.xlu0 %2597, %v2595
        %v2599 = vpop.permute.xlu0 %2598
        %v2601 = vadd.f32 %v2593, %v2599
        %v2602 = vadd.f32 %v2594, %v2599
        %2603 = vst [vmem:[%s366] sm:$0xff] %v2601
        %2604 = vst [vmem:[%s366 + $0x8] sm:$0xff] %v2602
        %s2605 = sand.u32 %s261, 1
        %s2606 = scalar_lea.sflag [#allocation4], %s2605
        %s2607 = sand.u32 %s261, 1
        %s2608 = smul.addr %s2607, 16
        %s2609 = scalar_lea.vmem [#allocation3], %s2608
        // Predicated region
        $region65: #{tpu_custom_call.1} parent=59 // pred_check
          %p2610 = pneg %p271
        $region66: #{tpu_custom_call.1} parent=59 // pred_check_branch
          %2612 = sbr.rel (%p2610) target = $region68
        $region67: #{tpu_custom_call.1} parent=59 // pred_region
          %s2613 = smul.u32 2, %s29
          %s2615 = ssub.s32 256, 256
          %2616 = vsyncadd %s2606, %s2615
          %s2617 = smul.addr %s28, 2
          %s2618 = sadd.s32 %s2613, %s2617
          %s2619 = smul.addr %s2618, 128
          %s2620 = scalar_lea.hbm %s10, %s2619
          %s2622 = sshll.u32 %s2609, 4
          %s2623 = int_to_ptr.vmem [resolvable:$true] %s2622
          %2625 = dma.vmem_to_hbm [thread:$0]  %s2623, 256, %s2620, %s2606
        $region68: #{tpu_custom_call.1} parent=59 // pred_fallthru
          _
      $region60: #{tpu_custom_call.1} parent=5 // pred_fallthru
        _
      %p2626 = scmp.le.s32.totalorder 2, %s19
      // Predicated region
      $region69: #{tpu_custom_call.1} parent=5 // pred_check
        %p2627 = pneg %p2626
      $region70: #{tpu_custom_call.1} parent=5 // pred_check_branch
        %2629 = sbr.rel (%p2627) target = $region72
      $region71: #{tpu_custom_call.1} parent=5 // pred_region
        %s2630 = ssub.s32 %s19, 2
        // Predicated region
        $region73: #{tpu_custom_call.1} parent=71 // pred_check
          %p2631 = pneg %p277
        $region74: #{tpu_custom_call.1} parent=71 // pred_check_branch
          %2633 = sbr.rel (%p2631) target = $region76
        $region75: #{tpu_custom_call.1} parent=71 // pred_region
          %s2634 = sand.u32 %s262, 1
          %s2635 = scalar_lea.sflag [#allocation4], %s2634
          %s2636 = sand.u32 %s262, 1
          %s2637 = smul.addr %s2636, 16
          %s2638 = scalar_lea.vmem [#allocation3], %s2637
          %2639 = dma.done %s2635, 256
        $region76: #{tpu_custom_call.1} parent=71 // pred_fallthru
          _
      $region72: #{tpu_custom_call.1} parent=5 // pred_fallthru
        _
    $region6: #{tpu_custom_call.1} parent=1 // loop_footer
      %s23 = sadd.s32 1, %s19
    $region7: #{tpu_custom_call.1} parent=1 // loop_footer_branch
      %18 = sbr.rel target = $region3
    $region8: #{tpu_custom_call.1} parent=1 // loop_exit
      _
    %2640 = vsyncpa [#allocation4], 1
    %s2641 = scalar_lea.sflag [#allocation4], 1
    %2642 = vsyncpa %s2641, 1

</llo_original>
